<compile_context>
chip_gen: v7x
topology: tpu7x:2x2x1
jax: 0.10.0
libtpu: 0.0.40
codegen_flags: <defaults>
</compile_context>

<pallas_src>
import functools

import jax
import jax.numpy as jnp
import numpy as np
from jax.experimental import pallas as pl
from jax.experimental.pallas import tpu as pltpu


def _cross_attn_kernel(tgt_ref, mem_ref, qpos_ref, pos_ref, w_ref, vec_ref,
                       out_ref, *, nhead, ln_eps):
    _, L, D = tgt_ref.shape
    S = mem_ref.shape[1]
    dh = D // nhead
    cd = w_ref.dtype                               # matmul-operand dtype (bf16 or f32)

    tgt = tgt_ref[0]                               # (L, D) f32
    mem = mem_ref[0]                               # (S, D) f32

    # Positional embeds fused in-kernel (VPU, hidden under the matmuls).
    q_in = (tgt + qpos_ref[0]).astype(cd)          # (L, D)
    k_in = (mem + pos_ref[0]).astype(cd)           # (S, D)
    v_in = mem.astype(cd)                          # (S, D)

    wq = w_ref[0]                                  # (D, D), scale pre-folded
    wk = w_ref[1]
    wv = w_ref[2]
    wo = w_ref[3]                                  # (D, D) = out_proj.weight.T
    bq = vec_ref[0:1]                              # (1, D) f32, scale pre-folded
    bk = vec_ref[1:2]
    bv = vec_ref[2:3]
    bo = vec_ref[3:4]
    gamma = vec_ref[4:5]
    beta = vec_ref[5:6]

    # Full-width in-projections: three (tokens, D) x (D, D) matmuls, f32 accum.
    Q = jnp.dot(q_in, wq, preferred_element_type=jnp.float32) + bq    # (L, D)
    K = jnp.dot(k_in, wk, preferred_element_type=jnp.float32) + bk    # (S, D)
    V = jnp.dot(v_in, wv, preferred_element_type=jnp.float32) + bv    # (S, D)

    # Arrange heads only for the score matmul: static lane slices -> new major axis.
    Qh = jnp.stack([Q[:, h * dh:(h + 1) * dh] for h in range(nhead)], 0).astype(cd)
    Kh = jnp.stack([K[:, h * dh:(h + 1) * dh] for h in range(nhead)], 0).astype(cd)
    Vh = jnp.stack([V[:, h * dh:(h + 1) * dh] for h in range(nhead)], 0).astype(cd)
    # Per-head out-proj slabs via sublane slices of wo (no data duplication).
    wo_h = jnp.stack([wo[h * dh:(h + 1) * dh, :] for h in range(nhead)], 0)  # (H, dh, D)

    # Scaled dot-product attention, heads as the dot_general batch dim.
    s = jax.lax.dot_general(Qh, Kh, (((2,), (2,)), ((0,), (0,))),
                            preferred_element_type=jnp.float32)       # (H, L, S) f32
    s = s - jnp.max(s, axis=-1, keepdims=True)
    p = jnp.exp(s)
    p = p * pl.reciprocal(jnp.sum(p, axis=-1, keepdims=True), approx=True)

    ctx = jax.lax.dot_general(p.astype(cd), Vh, (((2,), (1,)), ((0,), (0,))),
                              preferred_element_type=jnp.float32)     # (H, L, dh)

    # Out-projection: per-head (dh, D) slabs, summed over heads (dh*H < 128 here).
    oh = jax.lax.dot_general(ctx.astype(cd), wo_h, (((2,), (1,)), ((0,), (0,))),
                             preferred_element_type=jnp.float32)      # (H, L, D)
    attn = jnp.sum(oh, axis=0) + bo                                   # (L, D)

    # Residual + LayerNorm (dropout == 0 in this configuration), all f32.
    x = tgt + attn
    mean = jnp.mean(x, axis=-1, keepdims=True)
    xc = x - mean
    var = jnp.mean(xc * xc, axis=-1, keepdims=True)
    inv = jax.lax.rsqrt(var + ln_eps)
    out_ref[0] = xc * inv * gamma + beta


def prepare_params(params, *, nhead, compute_dtype=jnp.bfloat16):
    """One-time parameter packing (hoisted out of the per-call path).

    Returns:
      w    : (4, D, D) [WqT * 1/sqrt(dh), WkT, WvT, WoT]  in compute_dtype
      vecs : (6, D)    [bq * 1/sqrt(dh), bk, bv, bo, gamma, beta]  in f32
    """
    D = params["wq"].shape[0]
    dh = D // nhead
    scale = 1.0 / float(np.sqrt(dh))
    w = jnp.stack([params["wq"].T * scale,
                   params["wk"].T,
                   params["wv"].T,
                   params["wo"].T], axis=0).astype(compute_dtype)
    vecs = jnp.stack([params["bq"] * scale,
                      params["bk"],
                      params["bv"],
                      params["bo"],
                      params["ln_gamma"],
                      params["ln_beta"]], axis=0).astype(jnp.float32)
    return {"w": w, "vecs": vecs}


def cross_attention_layer(tgt, memory, packed, *, nhead,
                          pos=None, query_pos=None, ln_eps=1e-5):
    """tgt: (B, L, D), memory: (B, S, D). Returns (B, L, D) float32."""
    B, L, D = tgt.shape
    _, S, _ = memory.shape
    assert D % nhead == 0
    dh = D // nhead

    if query_pos is None:
        query_pos = jnp.zeros_like(tgt)
    if pos is None:
        pos = jnp.zeros_like(memory)

    kernel = functools.partial(_cross_attn_kernel, nhead=nhead, ln_eps=ln_eps)

    flops = B * (2 * D * D * (2 * L + 2 * S) + 4 * L * S * D)
    w_bytes = 4 * D * D * jnp.dtype(packed["w"].dtype).itemsize
    cost = pl.CostEstimate(
        flops=int(flops),
        transcendentals=int(B * nhead * L * S),
        bytes_accessed=int(4 * (3 * B * L * D + 2 * B * S * D + 6 * D) + w_bytes),
    )

    in_specs = [
        pl.BlockSpec((1, L, D), lambda b: (b, 0, 0)),     # tgt
        pl.BlockSpec((1, S, D), lambda b: (b, 0, 0)),     # memory
        pl.BlockSpec((1, L, D), lambda b: (b, 0, 0)),     # query_pos
        pl.BlockSpec((1, S, D), lambda b: (b, 0, 0)),     # pos
        pl.BlockSpec((4, D, D), lambda b: (0, 0, 0)),     # packed weights (resident)
        pl.BlockSpec((6, D), lambda b: (0, 0)),           # packed biases / LN (resident)
    ]
    out_specs = pl.BlockSpec((1, L, D), lambda b: (b, 0, 0))

    return pl.pallas_call(
        kernel,
        out_shape=jax.ShapeDtypeStruct((B, L, D), jnp.float32),
        grid=(B,),
        in_specs=in_specs,
        out_specs=out_specs,
        compiler_params=pltpu.CompilerParams(dimension_semantics=("parallel",)),
        cost_estimate=cost,
    )(tgt, memory, query_pos, pos, packed["w"], packed["vecs"])


def _reference(tgt, memory, params, *, nhead, pos=None, query_pos=None, ln_eps=1e-5):
    """Pure-JAX reference matching PyTorch MultiheadAttention + residual + LayerNorm."""
    B, L, D = tgt.shape
    head_dim = D // nhead
    q = tgt if query_pos is None else tgt + query_pos
    k = memory if pos is None else memory + pos
    v = memory
    Q = q @ params["wq"].T + params["bq"]
    K = k @ params["wk"].T + params["bk"]
    V = v @ params["wv"].T + params["bv"]
    Q = Q.reshape(B, L, nhead, head_dim).transpose(0, 2, 1, 3)
    K = K.reshape(B, -1, nhead, head_dim).transpose(0, 2, 1, 3)
    V = V.reshape(B, -1, nhead, head_dim).transpose(0, 2, 1, 3)
    s = jnp.einsum("bhld,bhsd->bhls", Q, K) / jnp.sqrt(head_dim).astype(jnp.float32)
    p = jax.nn.softmax(s, axis=-1)
    o = jnp.einsum("bhls,bhsd->bhld", p, V).transpose(0, 2, 1, 3).reshape(B, L, D)
    o = o @ params["wo"].T + params["bo"]
    x = tgt + o
    mean = x.mean(-1, keepdims=True)
    var = ((x - mean) ** 2).mean(-1, keepdims=True)
    return (x - mean) / jnp.sqrt(var + ln_eps) * params["ln_gamma"] + params["ln_beta"]


def _init_params(key, d_model):
    ks = jax.random.split(key, 4)

    def xavier(k, shape):
        bound = float(np.sqrt(6.0 / (shape[0] + shape[1])))
        return jax.random.uniform(k, shape, jnp.float32, -bound, bound)

    return {
        "wq": xavier(ks[0], (d_model, d_model)),
        "wk": xavier(ks[1], (d_model, d_model)),
        "wv": xavier(ks[2], (d_model, d_model)),
        "wo": xavier(ks[3], (d_model, d_model)),
        "bq": jnp.zeros((d_model,), jnp.float32),
        "bk": jnp.zeros((d_model,), jnp.float32),
        "bv": jnp.zeros((d_model,), jnp.float32),
        "bo": jnp.zeros((d_model,), jnp.float32),
        "ln_gamma": jnp.ones((d_model,), jnp.float32),
        "ln_beta": jnp.zeros((d_model,), jnp.float32),
    }


if __name__ == "__main__":
    B, L, S, D, NHEAD = 2, 8, 16, 32, 4

    key = jax.random.PRNGKey(0)
    k_tgt, k_mem, k_qp, k_pos, k_par = jax.random.split(key, 5)
    tgt = jax.random.normal(k_tgt, (B, L, D), jnp.float32)
    memory = jax.random.normal(k_mem, (B, S, D), jnp.float32)
    query_pos = jax.random.normal(k_qp, (B, L, D), jnp.float32)
    pos = jax.random.normal(k_pos, (B, S, D), jnp.float32)
    params = _init_params(k_par, D)

    ref = _reference(tgt, memory, params, nhead=NHEAD, pos=pos, query_pos=query_pos)

    layer = jax.jit(functools.partial(cross_attention_layer, nhead=NHEAD))

    # Full-precision compute path: tight check (approx reciprocal leaves ~1e-3 slack).
    packed_f32 = prepare_params(params, nhead=NHEAD, compute_dtype=jnp.float32)
    out_f32 = jax.block_until_ready(layer(tgt, memory, packed_f32,
                                          pos=pos, query_pos=query_pos))
    np.testing.assert_allclose(np.asarray(out_f32), np.asarray(ref),
                               rtol=5e-3, atol=5e-3)

    # Production path: bf16 matmul operands, f32 accumulation / softmax / LayerNorm.
    packed_bf16 = prepare_params(params, nhead=NHEAD, compute_dtype=jnp.bfloat16)
    out_bf16 = jax.block_until_ready(layer(tgt, memory, packed_bf16,
                                           pos=pos, query_pos=query_pos))
    np.testing.assert_allclose(np.asarray(out_bf16), np.asarray(ref),
                               rtol=1e-1, atol=1e-1)

    print("KERNEL_OK")
</pallas_src>

<mosaic_0001>
module attributes {stable_mosaic.version = 11 : i64} {
  func.func @_cross_attn_kernel(%arg0: i32, %arg1: memref<1x8x32xf32, #tpu.memory_space<vmem>>, %arg2: memref<1x16x32xf32, #tpu.memory_space<vmem>>, %arg3: memref<1x8x32xf32, #tpu.memory_space<vmem>>, %arg4: memref<1x16x32xf32, #tpu.memory_space<vmem>>, %arg5: memref<4x32x32xf32, #tpu.memory_space<vmem>>, %arg6: memref<6x32xf32, #tpu.memory_space<vmem>>, %arg7: memref<1x8x32xf32, #tpu.memory_space<vmem>>) attributes {dimension_semantics = [#tpu.dimension_semantics<parallel>], iteration_bounds = array<i64: 2>, scalar_prefetch = 0 : i64, scratch_operands = 0 : i64, tpu.core_type = #tpu.core_type<tc>, window_params = [{transform_indices = @transform_0, window_bounds = array<i64: 1, 8, 32>}, {transform_indices = @transform_1, window_bounds = array<i64: 1, 16, 32>}, {transform_indices = @transform_2, window_bounds = array<i64: 1, 8, 32>}, {transform_indices = @transform_3, window_bounds = array<i64: 1, 16, 32>}, {pipeline_mode = #tpu.pipeline_mode<synchronous>, transform_indices = @transform_4, window_bounds = array<i64: 4, 32, 32>}, {pipeline_mode = #tpu.pipeline_mode<synchronous>, transform_indices = @transform_5, window_bounds = array<i64: 6, 32>}, {transform_indices = @transform_6, window_bounds = array<i64: 1, 8, 32>}]} {
    %c0 = arith.constant 0 : index
    %c0_0 = arith.constant 0 : index
    %c0_1 = arith.constant 0 : index
    %0 = vector.load %arg1[%c0, %c0_0, %c0_1] : memref<1x8x32xf32, #tpu.memory_space<vmem>>, vector<1x8x32xf32>
    %1 = vector.shape_cast %0 : vector<1x8x32xf32> to vector<8x32xf32>
    %c0_2 = arith.constant 0 : index
    %c0_3 = arith.constant 0 : index
    %c0_4 = arith.constant 0 : index
    %2 = vector.load %arg2[%c0_2, %c0_3, %c0_4] : memref<1x16x32xf32, #tpu.memory_space<vmem>>, vector<1x16x32xf32>
    %3 = vector.shape_cast %2 : vector<1x16x32xf32> to vector<16x32xf32>
    %c0_5 = arith.constant 0 : index
    %c0_6 = arith.constant 0 : index
    %c0_7 = arith.constant 0 : index
    %4 = vector.load %arg3[%c0_5, %c0_6, %c0_7] : memref<1x8x32xf32, #tpu.memory_space<vmem>>, vector<1x8x32xf32>
    %5 = vector.shape_cast %4 : vector<1x8x32xf32> to vector<8x32xf32>
    %6 = arith.addf %1, %5 : vector<8x32xf32>
    %c0_8 = arith.constant 0 : index
    %c0_9 = arith.constant 0 : index
    %c0_10 = arith.constant 0 : index
    %7 = vector.load %arg4[%c0_8, %c0_9, %c0_10] : memref<1x16x32xf32, #tpu.memory_space<vmem>>, vector<1x16x32xf32>
    %8 = vector.shape_cast %7 : vector<1x16x32xf32> to vector<16x32xf32>
    %9 = arith.addf %3, %8 : vector<16x32xf32>
    %c0_11 = arith.constant 0 : index
    %c0_12 = arith.constant 0 : index
    %c0_13 = arith.constant 0 : index
    %10 = vector.load %arg5[%c0_11, %c0_12, %c0_13] : memref<4x32x32xf32, #tpu.memory_space<vmem>>, vector<1x32x32xf32>
    %11 = vector.shape_cast %10 : vector<1x32x32xf32> to vector<32x32xf32>
    %c1 = arith.constant 1 : index
    %c0_14 = arith.constant 0 : index
    %c0_15 = arith.constant 0 : index
    %12 = vector.load %arg5[%c1, %c0_14, %c0_15] : memref<4x32x32xf32, #tpu.memory_space<vmem>>, vector<1x32x32xf32>
    %13 = vector.shape_cast %12 : vector<1x32x32xf32> to vector<32x32xf32>
    %c2 = arith.constant 2 : index
    %c0_16 = arith.constant 0 : index
    %c0_17 = arith.constant 0 : index
    %14 = vector.load %arg5[%c2, %c0_16, %c0_17] : memref<4x32x32xf32, #tpu.memory_space<vmem>>, vector<1x32x32xf32>
    %15 = vector.shape_cast %14 : vector<1x32x32xf32> to vector<32x32xf32>
    %c3 = arith.constant 3 : index
    %c0_18 = arith.constant 0 : index
    %c0_19 = arith.constant 0 : index
    %16 = vector.load %arg5[%c3, %c0_18, %c0_19] : memref<4x32x32xf32, #tpu.memory_space<vmem>>, vector<1x32x32xf32>
    %17 = vector.shape_cast %16 : vector<1x32x32xf32> to vector<32x32xf32>
    %c0_20 = arith.constant 0 : index
    %c0_21 = arith.constant 0 : index
    %18 = vector.load %arg6[%c0_20, %c0_21] : memref<6x32xf32, #tpu.memory_space<vmem>>, vector<1x32xf32>
    %c1_22 = arith.constant 1 : index
    %c0_23 = arith.constant 0 : index
    %19 = vector.load %arg6[%c1_22, %c0_23] : memref<6x32xf32, #tpu.memory_space<vmem>>, vector<1x32xf32>
    %c2_24 = arith.constant 2 : index
    %c0_25 = arith.constant 0 : index
    %20 = vector.load %arg6[%c2_24, %c0_25] : memref<6x32xf32, #tpu.memory_space<vmem>>, vector<1x32xf32>
    %c3_26 = arith.constant 3 : index
    %c0_27 = arith.constant 0 : index
    %21 = vector.load %arg6[%c3_26, %c0_27] : memref<6x32xf32, #tpu.memory_space<vmem>>, vector<1x32xf32>
    %c4 = arith.constant 4 : index
    %c0_28 = arith.constant 0 : index
    %22 = vector.load %arg6[%c4, %c0_28] : memref<6x32xf32, #tpu.memory_space<vmem>>, vector<1x32xf32>
    %c5 = arith.constant 5 : index
    %c0_29 = arith.constant 0 : index
    %23 = vector.load %arg6[%c5, %c0_29] : memref<6x32xf32, #tpu.memory_space<vmem>>, vector<1x32xf32>
    %cst = arith.constant dense<0.000000e+00> : vector<8x32xf32>
    %24 = tpu.matmul %6, %11, %cst {dimension_numbers = #tpu.dot_dimension_numbers<[1], [0], [0], [1], [0, 0, 1, 1], [], []>} : vector<8x32xf32>, vector<32x32xf32>, vector<8x32xf32> -> vector<8x32xf32>
    %25 = vector.broadcast %18 : vector<1x32xf32> to vector<8x32xf32>
    %26 = arith.addf %24, %25 : vector<8x32xf32>
    %cst_30 = arith.constant dense<0.000000e+00> : vector<16x32xf32>
    %27 = tpu.matmul %9, %13, %cst_30 {dimension_numbers = #tpu.dot_dimension_numbers<[1], [0], [0], [1], [0, 0, 1, 1], [], []>} : vector<16x32xf32>, vector<32x32xf32>, vector<16x32xf32> -> vector<16x32xf32>
    %28 = vector.broadcast %19 : vector<1x32xf32> to vector<16x32xf32>
    %29 = arith.addf %27, %28 : vector<16x32xf32>
    %cst_31 = arith.constant dense<0.000000e+00> : vector<16x32xf32>
    %30 = tpu.matmul %3, %15, %cst_31 {dimension_numbers = #tpu.dot_dimension_numbers<[1], [0], [0], [1], [0, 0, 1, 1], [], []>} : vector<16x32xf32>, vector<32x32xf32>, vector<16x32xf32> -> vector<16x32xf32>
    %31 = vector.broadcast %20 : vector<1x32xf32> to vector<16x32xf32>
    %32 = arith.addf %30, %31 : vector<16x32xf32>
    %33 = vector.extract_strided_slice %26 {offsets = [0, 0], sizes = [8, 8], strides = [1, 1]} : vector<8x32xf32> to vector<8x8xf32>
    %34 = vector.extract_strided_slice %26 {offsets = [0, 8], sizes = [8, 8], strides = [1, 1]} : vector<8x32xf32> to vector<8x8xf32>
    %35 = vector.extract_strided_slice %26 {offsets = [0, 16], sizes = [8, 8], strides = [1, 1]} : vector<8x32xf32> to vector<8x8xf32>
    %36 = vector.extract_strided_slice %26 {offsets = [0, 24], sizes = [8, 8], strides = [1, 1]} : vector<8x32xf32> to vector<8x8xf32>
    %37 = vector.shape_cast %33 : vector<8x8xf32> to vector<1x8x8xf32>
    %38 = vector.shape_cast %34 : vector<8x8xf32> to vector<1x8x8xf32>
    %39 = vector.shape_cast %35 : vector<8x8xf32> to vector<1x8x8xf32>
    %40 = vector.shape_cast %36 : vector<8x8xf32> to vector<1x8x8xf32>
    %41 = tpu.concatenate %37, %38, %39, %40 in 0 : vector<1x8x8xf32>, vector<1x8x8xf32>, vector<1x8x8xf32>, vector<1x8x8xf32> -> vector<4x8x8xf32>
    %42 = vector.extract_strided_slice %29 {offsets = [0, 0], sizes = [16, 8], strides = [1, 1]} : vector<16x32xf32> to vector<16x8xf32>
    %43 = vector.extract_strided_slice %29 {offsets = [0, 8], sizes = [16, 8], strides = [1, 1]} : vector<16x32xf32> to vector<16x8xf32>
    %44 = vector.extract_strided_slice %29 {offsets = [0, 16], sizes = [16, 8], strides = [1, 1]} : vector<16x32xf32> to vector<16x8xf32>
    %45 = vector.extract_strided_slice %29 {offsets = [0, 24], sizes = [16, 8], strides = [1, 1]} : vector<16x32xf32> to vector<16x8xf32>
    %46 = vector.shape_cast %42 : vector<16x8xf32> to vector<1x16x8xf32>
    %47 = vector.shape_cast %43 : vector<16x8xf32> to vector<1x16x8xf32>
    %48 = vector.shape_cast %44 : vector<16x8xf32> to vector<1x16x8xf32>
    %49 = vector.shape_cast %45 : vector<16x8xf32> to vector<1x16x8xf32>
    %50 = tpu.concatenate %46, %47, %48, %49 in 0 : vector<1x16x8xf32>, vector<1x16x8xf32>, vector<1x16x8xf32>, vector<1x16x8xf32> -> vector<4x16x8xf32>
    %51 = vector.extract_strided_slice %32 {offsets = [0, 0], sizes = [16, 8], strides = [1, 1]} : vector<16x32xf32> to vector<16x8xf32>
    %52 = vector.extract_strided_slice %32 {offsets = [0, 8], sizes = [16, 8], strides = [1, 1]} : vector<16x32xf32> to vector<16x8xf32>
    %53 = vector.extract_strided_slice %32 {offsets = [0, 16], sizes = [16, 8], strides = [1, 1]} : vector<16x32xf32> to vector<16x8xf32>
    %54 = vector.extract_strided_slice %32 {offsets = [0, 24], sizes = [16, 8], strides = [1, 1]} : vector<16x32xf32> to vector<16x8xf32>
    %55 = vector.shape_cast %51 : vector<16x8xf32> to vector<1x16x8xf32>
    %56 = vector.shape_cast %52 : vector<16x8xf32> to vector<1x16x8xf32>
    %57 = vector.shape_cast %53 : vector<16x8xf32> to vector<1x16x8xf32>
    %58 = vector.shape_cast %54 : vector<16x8xf32> to vector<1x16x8xf32>
    %59 = tpu.concatenate %55, %56, %57, %58 in 0 : vector<1x16x8xf32>, vector<1x16x8xf32>, vector<1x16x8xf32>, vector<1x16x8xf32> -> vector<4x16x8xf32>
    %60 = vector.extract_strided_slice %17 {offsets = [0, 0], sizes = [8, 32], strides = [1, 1]} : vector<32x32xf32> to vector<8x32xf32>
    %61 = vector.extract_strided_slice %17 {offsets = [8, 0], sizes = [8, 32], strides = [1, 1]} : vector<32x32xf32> to vector<8x32xf32>
    %62 = vector.extract_strided_slice %17 {offsets = [16, 0], sizes = [8, 32], strides = [1, 1]} : vector<32x32xf32> to vector<8x32xf32>
    %63 = vector.extract_strided_slice %17 {offsets = [24, 0], sizes = [8, 32], strides = [1, 1]} : vector<32x32xf32> to vector<8x32xf32>
    %64 = vector.shape_cast %60 : vector<8x32xf32> to vector<1x8x32xf32>
    %65 = vector.shape_cast %61 : vector<8x32xf32> to vector<1x8x32xf32>
    %66 = vector.shape_cast %62 : vector<8x32xf32> to vector<1x8x32xf32>
    %67 = vector.shape_cast %63 : vector<8x32xf32> to vector<1x8x32xf32>
    %68 = tpu.concatenate %64, %65, %66, %67 in 0 : vector<1x8x32xf32>, vector<1x8x32xf32>, vector<1x8x32xf32>, vector<1x8x32xf32> -> vector<4x8x32xf32>
    %cst_32 = arith.constant dense<0.000000e+00> : vector<4x8x16xf32>
    %69 = tpu.matmul %41, %50, %cst_32 {dimension_numbers = #tpu.dot_dimension_numbers<[2], [2], [1], [1], [0, 0, 0, 1, 1, 1], [0], [0]>} : vector<4x8x8xf32>, vector<4x16x8xf32>, vector<4x8x16xf32> -> vector<4x8x16xf32>
    %cst_33 = arith.constant dense<0xFF800000> : vector<4x8xf32>
    %70 = vector.multi_reduction <maximumf>, %69, %cst_33 [2] : vector<4x8x16xf32> to vector<4x8xf32>
    %71 = vector.shape_cast %70 : vector<4x8xf32> to vector<4x8x1xf32>
    %72 = vector.broadcast %71 : vector<4x8x1xf32> to vector<4x8x16xf32>
    %73 = arith.subf %69, %72 : vector<4x8x16xf32>
    %74 = math.exp %73 : vector<4x8x16xf32>
    %cst_34 = arith.constant dense<0.000000e+00> : vector<4x8xf32>
    %75 = vector.multi_reduction <add>, %74, %cst_34 [2] : vector<4x8x16xf32> to vector<4x8xf32>
    %76 = vector.shape_cast %75 : vector<4x8xf32> to vector<4x8x1xf32>
    %77 = tpu.reciprocal %76 {approx = true} : vector<4x8x1xf32> -> vector<4x8x1xf32>
    %78 = vector.broadcast %77 : vector<4x8x1xf32> to vector<4x8x16xf32>
    %79 = arith.mulf %74, %78 : vector<4x8x16xf32>
    %cst_35 = arith.constant dense<0.000000e+00> : vector<4x8x8xf32>
    %80 = tpu.matmul %79, %59, %cst_35 {dimension_numbers = #tpu.dot_dimension_numbers<[2], [1], [1], [2], [0, 0, 0, 1, 1, 2], [0], [0]>} : vector<4x8x16xf32>, vector<4x16x8xf32>, vector<4x8x8xf32> -> vector<4x8x8xf32>
    %cst_36 = arith.constant dense<0.000000e+00> : vector<4x8x32xf32>
    %81 = tpu.matmul %80, %68, %cst_36 {dimension_numbers = #tpu.dot_dimension_numbers<[2], [1], [1], [2], [0, 0, 0, 1, 1, 2], [0], [0]>} : vector<4x8x8xf32>, vector<4x8x32xf32>, vector<4x8x32xf32> -> vector<4x8x32xf32>
    %cst_37 = arith.constant dense<0.000000e+00> : vector<8x32xf32>
    %82 = vector.multi_reduction <add>, %81, %cst_37 [0] : vector<4x8x32xf32> to vector<8x32xf32>
    %83 = vector.broadcast %21 : vector<1x32xf32> to vector<8x32xf32>
    %84 = arith.addf %82, %83 : vector<8x32xf32>
    %85 = arith.addf %1, %84 : vector<8x32xf32>
    %cst_38 = arith.constant dense<0.000000e+00> : vector<8xf32>
    %86 = vector.multi_reduction <add>, %85, %cst_38 [1] : vector<8x32xf32> to vector<8xf32>
    %87 = vector.shape_cast %86 : vector<8xf32> to vector<8x1xf32>
    %cst_39 = arith.constant 3.200000e+01 : f32
    %88 = vector.broadcast %cst_39 : f32 to vector<8x1xf32>
    %89 = arith.divf %87, %88 : vector<8x1xf32>
    %90 = vector.broadcast %89 : vector<8x1xf32> to vector<8x32xf32>
    %91 = arith.subf %85, %90 : vector<8x32xf32>
    %92 = arith.mulf %91, %91 : vector<8x32xf32>
    %cst_40 = arith.constant dense<0.000000e+00> : vector<8xf32>
    %93 = vector.multi_reduction <add>, %92, %cst_40 [1] : vector<8x32xf32> to vector<8xf32>
    %94 = vector.shape_cast %93 : vector<8xf32> to vector<8x1xf32>
    %cst_41 = arith.constant 3.200000e+01 : f32
    %95 = vector.broadcast %cst_41 : f32 to vector<8x1xf32>
    %96 = arith.divf %94, %95 : vector<8x1xf32>
    %cst_42 = arith.constant 9.99999974E-6 : f32
    %97 = vector.broadcast %cst_42 : f32 to vector<8x1xf32>
    %98 = arith.addf %96, %97 : vector<8x1xf32>
    %99 = math.rsqrt %98 : vector<8x1xf32>
    %100 = vector.broadcast %99 : vector<8x1xf32> to vector<8x32xf32>
    %101 = arith.mulf %91, %100 : vector<8x32xf32>
    %102 = vector.broadcast %22 : vector<1x32xf32> to vector<8x32xf32>
    %103 = arith.mulf %101, %102 : vector<8x32xf32>
    %104 = vector.broadcast %23 : vector<1x32xf32> to vector<8x32xf32>
    %105 = arith.addf %103, %104 : vector<8x32xf32>
    %c0_43 = arith.constant 0 : index
    %c0_44 = arith.constant 0 : index
    %c0_45 = arith.constant 0 : index
    %106 = vector.load %arg7[%c0_43, %c0_44, %c0_45] : memref<1x8x32xf32, #tpu.memory_space<vmem>>, vector<1x8x32xf32>
    %107 = vector.shape_cast %106 : vector<1x8x32xf32> to vector<8x32xf32>
    %108 = vector.shape_cast %105 : vector<8x32xf32> to vector<1x8x32xf32>
    tpu.vector_store %arg7[%c0_43, %c0_44, %c0_45], %108 {strides = array<i32>} : memref<1x8x32xf32, #tpu.memory_space<vmem>>, vector<1x8x32xf32>,
    return
  }
  func.func @transform_0(%arg0: i32) -> (i32, i32, i32) {
    %c0_i32 = arith.constant 0 : i32
    %c0_i32_0 = arith.constant 0 : i32
    %c0_i32_1 = arith.constant 0 : i32
    return %arg0, %c0_i32, %c0_i32_0 : i32, i32, i32
  }
  func.func @transform_1(%arg0: i32) -> (i32, i32, i32) {
    %c0_i32 = arith.constant 0 : i32
    %c0_i32_0 = arith.constant 0 : i32
    %c0_i32_1 = arith.constant 0 : i32
    return %arg0, %c0_i32, %c0_i32_0 : i32, i32, i32
  }
  func.func @transform_2(%arg0: i32) -> (i32, i32, i32) {
    %c0_i32 = arith.constant 0 : i32
    %c0_i32_0 = arith.constant 0 : i32
    %c0_i32_1 = arith.constant 0 : i32
    return %arg0, %c0_i32, %c0_i32_0 : i32, i32, i32
  }
  func.func @transform_3(%arg0: i32) -> (i32, i32, i32) {
    %c0_i32 = arith.constant 0 : i32
    %c0_i32_0 = arith.constant 0 : i32
    %c0_i32_1 = arith.constant 0 : i32
    return %arg0, %c0_i32, %c0_i32_0 : i32, i32, i32
  }
  func.func @transform_4(%arg0: i32) -> (i32, i32, i32) {
    %c0_i32 = arith.constant 0 : i32
    %c0_i32_0 = arith.constant 0 : i32
    %c0_i32_1 = arith.constant 0 : i32
    %c0_i32_2 = arith.constant 0 : i32
    return %c0_i32, %c0_i32_0, %c0_i32_1 : i32, i32, i32
  }
  func.func @transform_5(%arg0: i32) -> (i32, i32) {
    %c0_i32 = arith.constant 0 : i32
    %c0_i32_0 = arith.constant 0 : i32
    %c0_i32_1 = arith.constant 0 : i32
    return %c0_i32, %c0_i32_0 : i32, i32
  }
  func.func @transform_6(%arg0: i32) -> (i32, i32, i32) {
    %c0_i32 = arith.constant 0 : i32
    %c0_i32_0 = arith.constant 0 : i32
    %c0_i32_1 = arith.constant 0 : i32
    return %arg0, %c0_i32, %c0_i32_0 : i32, i32, i32
  }
}

</mosaic_0001>

<llo_original>
// kernel: cross_attention_layer.1
$region0: #{cross_attention_layer.1}
  #allocation0 [shape = 'u32[]', space=smem, size = 0x4, offset = 0x4, fixed_abs, tag = 'smem constant byte address 0x4 - core index']
  #allocation1 [shape = 'u32[144,128]{1,0:T(1,128)}', space=vmem, size = 0x12000, scoped, tag = 'internal scratch']
  %s0 = inlined_call_operand.hbm [shape: f32[2,8,32], index: 0, kind: input, shape index: {}]
  %s1 = inlined_call_operand.hbm [shape: f32[2,16,32], index: 1, kind: input, shape index: {}]
  %s2 = inlined_call_operand.vmem [shape: f32[2,8,32], index: 2, kind: input, shape index: {}]
  %s3 = inlined_call_operand.hbm [shape: f32[2,16,32], index: 3, kind: input, shape index: {}]
  %s4 = inlined_call_operand.hbm [shape: f32[4,32,32], index: 4, kind: input, shape index: {}]
  %s5 = inlined_call_operand.hbm [shape: f32[6,32], index: 5, kind: input, shape index: {}]
  %s6 = inlined_call_operand.hbm [shape: f32[2,8,32], index: 6, kind: output, shape index: {}]
  %s7 = sld [smem:[#allocation0]]
  $region77: #{cross_attention_layer.1} parent=0
    _
  %s9 = ssub.s32 1, %s7
  %s10 = scalar_select 0, %s9, %s7
  $region1: #{cross_attention_layer.1} parent=0
    #allocation2 [shape = 'u8[8192]{0}', space=vmem, size = 0x2000, scoped, tag = 'input window, operand 0']
    #allocation3 [shape = 's32[2]{0}', space=sflag, size = 0x8, scoped, tag = 'scoped memory for cross_attention_layer.1']
    #allocation4 [shape = 's32[2]{0}', space=sflag, size = 0x8, scoped, tag = 'scoped memory for cross_attention_layer.1']
    #allocation5 [shape = 'u8[16384]{0}', space=vmem, size = 0x4000, scoped, tag = 'input window, operand 1']
    #allocation6 [shape = 's32[2]{0}', space=sflag, size = 0x8, scoped, tag = 'scoped memory for cross_attention_layer.1']
    #allocation7 [shape = 'u8[16384]{0}', space=vmem, size = 0x4000, scoped, tag = 'input window, operand 3']
    #allocation8 [shape = 'u8[65536]{0}', space=vmem, size = 0x10000, scoped, tag = 'input window, operand 4, single buffered']
    #allocation9 [shape = 's32[1]{0}', space=sflag, size = 0x4, scoped, tag = 'scoped memory for cross_attention_layer.1']
    #allocation10 [shape = 'u8[4096]{0}', space=vmem, size = 0x1000, scoped, tag = 'input window, operand 5, single buffered']
    #allocation11 [shape = 'u8[8192]{0}', space=vmem, size = 0x2000, scoped, tag = 'output window, operand 0']
    %11 = vsyncpa [#allocation3], 0
    %s12 = scalar_lea.sflag [#allocation3], 1
    %13 = vsyncpa %s12, 0
    %14 = vsyncpa [#allocation6], 0
    %s15 = scalar_lea.sflag [#allocation6], 1
    %16 = vsyncpa %s15, 0
    %17 = vsyncpa [#allocation9], 0
    %18 = vsyncpa [#allocation4], 0
    %s19 = scalar_lea.sflag [#allocation4], 1
    %20 = vsyncpa %s19, 0
    loop: start=0, step=1, limit=4
    $region2: #{cross_attention_layer.1} parent=1 // loop_pre_header
      _
    $region3: #{cross_attention_layer.1} parent=1 // loop_header
      %s22 = sphi 0, %s26
      %p23 = scmp.ge.s32.totalorder %s22, 4
      %s32 = sphi 0, %s34
      %s35 = sphi 0, %s32
      %s36 = sphi 0, %s35
      %s52 = sphi 0, %s36
      %s58 = sphi 0, %s60
      %s61 = sphi 0, %s58
      %s62 = sphi 0, %s61
      %s78 = sphi 0, %s62
      %s84 = sphi 0, %s86
      %s87 = sphi 0, %s84
      %s88 = sphi 0, %s87
      %s104 = sphi 0, %s88
      %s110 = sphi 0, %s112
      %s113 = sphi 0, %s110
      %s114 = sphi 0, %s113
      %s130 = sphi 0, %s114
      %s134 = sphi 0, %s134
      %s136 = sphi 0, %s134
      %s137 = sphi 0, %s136
      %s151 = sphi 0, %s137
      %s155 = sphi 0, %s155
      %s157 = sphi 0, %s155
      %s158 = sphi 0, %s157
      %s172 = sphi 0, %s158
      %s178 = sphi 0, %s180
      %s181 = sphi 0, %s178
      %s182 = sphi 0, %s181
      %s198 = sphi 0, %s182
    $region4: #{cross_attention_layer.1} parent=1 // loop_header_branch
      %25 = sbr.rel (%p23) target = $region8
    $region5: #{cross_attention_layer.1} parent=1 // loop_body
      %s27 = ssub.s32 %s22, 1
      %s28 = ssub.s32 %s22, 2
      %s29 = sadd.s32 %s22, 1
      %s30 = ssub.s32 %s22, %s29
      %p31 = scmp.eq.s32.totalorder %s30, 0
      %s33 = sadd.s32 %s32, 1
      %s34 = scalar_select %p31, %s32, %s33
      %p37 = pneg %p31
      %p38 = scmp.eq.s32.totalorder %s22, 1
      %p39 = por %p37, %p38
      %p40 = scmp.ne.s32.totalorder %s32, %s35
      %p41 = scmp.eq.s32.totalorder %s22, 0
      %p42 = por %p40, %p41
      %p43 = scmp.ne.s32.totalorder %s32, %s35
      %p44 = scmp.eq.s32.totalorder %s27, 1
      %p45 = por %p43, %p44
      %p46 = scmp.ne.s32.totalorder %s35, %s36
      %p47 = scmp.eq.s32.totalorder %s27, 0
      %p48 = por %p46, %p47
      %p49 = scmp.ne.s32.totalorder %s35, %s36
      %p50 = scmp.eq.s32.totalorder %s28, 1
      %p51 = por %p49, %p50
      %p53 = scmp.ne.s32.totalorder %s36, %s52
      %p54 = scmp.eq.s32.totalorder %s28, 0
      %p55 = por %p53, %p54
      %s56 = ssub.s32 %s22, %s29
      %p57 = scmp.eq.s32.totalorder %s56, 0
      %s59 = sadd.s32 %s58, 1
      %s60 = scalar_select %p57, %s58, %s59
      %p63 = pneg %p57
      %p64 = scmp.eq.s32.totalorder %s22, 1
      %p65 = por %p63, %p64
      %p66 = scmp.ne.s32.totalorder %s58, %s61
      %p67 = scmp.eq.s32.totalorder %s22, 0
      %p68 = por %p66, %p67
      %p69 = scmp.ne.s32.totalorder %s58, %s61
      %p70 = scmp.eq.s32.totalorder %s27, 1
      %p71 = por %p69, %p70
      %p72 = scmp.ne.s32.totalorder %s61, %s62
      %p73 = scmp.eq.s32.totalorder %s27, 0
      %p74 = por %p72, %p73
      %p75 = scmp.ne.s32.totalorder %s61, %s62
      %p76 = scmp.eq.s32.totalorder %s28, 1
      %p77 = por %p75, %p76
      %p79 = scmp.ne.s32.totalorder %s62, %s78
      %p80 = scmp.eq.s32.totalorder %s28, 0
      %p81 = por %p79, %p80
      %s82 = ssub.s32 %s22, %s29
      %p83 = scmp.eq.s32.totalorder %s82, 0
      %s85 = sadd.s32 %s84, 1
      %s86 = scalar_select %p83, %s84, %s85
      %p89 = pneg %p83
      %p90 = scmp.eq.s32.totalorder %s22, 1
      %p91 = por %p89, %p90
      %p92 = scmp.ne.s32.totalorder %s84, %s87
      %p93 = scmp.eq.s32.totalorder %s22, 0
      %p94 = por %p92, %p93
      %p95 = scmp.ne.s32.totalorder %s84, %s87
      %p96 = scmp.eq.s32.totalorder %s27, 1
      %p97 = por %p95, %p96
      %p98 = scmp.ne.s32.totalorder %s87, %s88
      %p99 = scmp.eq.s32.totalorder %s27, 0
      %p100 = por %p98, %p99
      %p101 = scmp.ne.s32.totalorder %s87, %s88
      %p102 = scmp.eq.s32.totalorder %s28, 1
      %p103 = por %p101, %p102
      %p105 = scmp.ne.s32.totalorder %s88, %s104
      %p106 = scmp.eq.s32.totalorder %s28, 0
      %p107 = por %p105, %p106
      %s108 = ssub.s32 %s22, %s29
      %p109 = scmp.eq.s32.totalorder %s108, 0
      %s111 = sadd.s32 %s110, 1
      %s112 = scalar_select %p109, %s110, %s111
      %p115 = pneg %p109
      %p116 = scmp.eq.s32.totalorder %s22, 1
      %p117 = por %p115, %p116
      %p118 = scmp.ne.s32.totalorder %s110, %s113
      %p119 = scmp.eq.s32.totalorder %s22, 0
      %p120 = por %p118, %p119
      %p121 = scmp.ne.s32.totalorder %s110, %s113
      %p122 = scmp.eq.s32.totalorder %s27, 1
      %p123 = por %p121, %p122
      %p124 = scmp.ne.s32.totalorder %s113, %s114
      %p125 = scmp.eq.s32.totalorder %s27, 0
      %p126 = por %p124, %p125
      %p127 = scmp.ne.s32.totalorder %s113, %s114
      %p128 = scmp.eq.s32.totalorder %s28, 1
      %p129 = por %p127, %p128
      %p131 = scmp.ne.s32.totalorder %s114, %s130
      %p132 = scmp.eq.s32.totalorder %s28, 0
      %p133 = por %p131, %p132
      %s135 = sadd.s32 %s134, 1
      %p138 = scmp.eq.s32.totalorder %s22, 1
      %p139 = scmp.ne.s32.totalorder %s134, %s136
      %p140 = scmp.eq.s32.totalorder %s22, 0
      %p141 = por %p139, %p140
      %p142 = scmp.ne.s32.totalorder %s134, %s136
      %p143 = scmp.eq.s32.totalorder %s27, 1
      %p144 = por %p142, %p143
      %p145 = scmp.ne.s32.totalorder %s136, %s137
      %p146 = scmp.eq.s32.totalorder %s27, 0
      %p147 = por %p145, %p146
      %p148 = scmp.ne.s32.totalorder %s136, %s137
      %p149 = scmp.eq.s32.totalorder %s28, 1
      %p150 = por %p148, %p149
      %p152 = scmp.ne.s32.totalorder %s137, %s151
      %p153 = scmp.eq.s32.totalorder %s28, 0
      %p154 = por %p152, %p153
      %s156 = sadd.s32 %s155, 1
      %p159 = scmp.eq.s32.totalorder %s22, 1
      %p160 = scmp.ne.s32.totalorder %s155, %s157
      %p161 = scmp.eq.s32.totalorder %s22, 0
      %p162 = por %p160, %p161
      %p163 = scmp.ne.s32.totalorder %s155, %s157
      %p164 = scmp.eq.s32.totalorder %s27, 1
      %p165 = por %p163, %p164
      %p166 = scmp.ne.s32.totalorder %s157, %s158
      %p167 = scmp.eq.s32.totalorder %s27, 0
      %p168 = por %p166, %p167
      %p169 = scmp.ne.s32.totalorder %s157, %s158
      %p170 = scmp.eq.s32.totalorder %s28, 1
      %p171 = por %p169, %p170
      %p173 = scmp.ne.s32.totalorder %s158, %s172
      %p174 = scmp.eq.s32.totalorder %s28, 0
      %p175 = por %p173, %p174
      %s176 = ssub.s32 %s22, %s29
      %p177 = scmp.eq.s32.totalorder %s176, 0
      %s179 = sadd.s32 %s178, 1
      %s180 = scalar_select %p177, %s178, %s179
      %p183 = pneg %p177
      %p184 = scmp.eq.s32.totalorder %s22, 1
      %p185 = por %p183, %p184
      %p186 = scmp.ne.s32.totalorder %s178, %s181
      %p187 = scmp.eq.s32.totalorder %s22, 0
      %p188 = por %p186, %p187
      %p189 = scmp.ne.s32.totalorder %s178, %s181
      %p190 = scmp.eq.s32.totalorder %s27, 1
      %p191 = por %p189, %p190
      %p192 = scmp.ne.s32.totalorder %s181, %s182
      %p193 = scmp.eq.s32.totalorder %s27, 0
      %p194 = por %p192, %p193
      %p195 = scmp.ne.s32.totalorder %s181, %s182
      %p196 = scmp.eq.s32.totalorder %s28, 1
      %p197 = por %p195, %p196
      %p199 = scmp.ne.s32.totalorder %s182, %s198
      %p200 = scmp.eq.s32.totalorder %s28, 0
      %p201 = por %p199, %p200
      %p202 = scmp.le.s32.totalorder 1, %s22
      %p203 = scmp.lt.s32.totalorder %s22, 3
      %p204 = pnand %p202, %p203
      %p205 = pneg %p204
      // Predicated region
      $region9: #{cross_attention_layer.1} parent=5 // pred_check
        _
      $region10: #{cross_attention_layer.1} parent=5 // pred_check_branch
        %207 = sbr.rel (%p204) target = $region12
      $region11: #{cross_attention_layer.1} parent=5 // pred_region
        %s208 = ssub.s32 %s22, 1
        // Predicated region
        $region13: #{cross_attention_layer.1} parent=11 // pred_check
          %p209 = pneg %p147
        $region14: #{cross_attention_layer.1} parent=11 // pred_check_branch
          %211 = sbr.rel (%p209) target = $region16
        $region15: #{cross_attention_layer.1} parent=11 // pred_region
          %s213 = ssub.s32 2048, 2048
          %214 = vsyncadd [#allocation9], %s213
          %s215 = sshll.u32 [#allocation8], 4
          %s216 = int_to_ptr.vmem [resolvable:$true] %s215
          %221 = dma.hbm_to_vmem [thread:$0]  %s4, 2048, %s216, [#allocation9], 128, 128, 8
        $region16: #{cross_attention_layer.1} parent=11 // pred_fallthru
          _
        // Predicated region
        $region17: #{cross_attention_layer.1} parent=11 // pred_check
          %p222 = pneg %p168
        $region18: #{cross_attention_layer.1} parent=11 // pred_check_branch
          %224 = sbr.rel (%p222) target = $region20
        $region19: #{cross_attention_layer.1} parent=11 // pred_region
          %s226 = ssub.s32 128, 128
          %227 = vsyncadd [#allocation9], %s226
          %s229 = sshll.u32 [#allocation10], 4
          %s230 = int_to_ptr.vmem [resolvable:$true] %s229
          %232 = dma.hbm_to_vmem [thread:$0]  %s5, 128, %s230, [#allocation9]
        $region20: #{cross_attention_layer.1} parent=11 // pred_fallthru
          _
      $region12: #{cross_attention_layer.1} parent=5 // pred_fallthru
        _
      %p233 = scmp.lt.s32.totalorder %s22, 2
      // Predicated region
      $region21: #{cross_attention_layer.1} parent=5 // pred_check
        %p234 = pneg %p233
      $region22: #{cross_attention_layer.1} parent=5 // pred_check_branch
        %236 = sbr.rel (%p234) target = $region24
      $region23: #{cross_attention_layer.1} parent=5 // pred_region
        // Predicated region
        $region25: #{cross_attention_layer.1} parent=23 // pred_check
          %p237 = pneg %p42
        $region26: #{cross_attention_layer.1} parent=23 // pred_check_branch
          %239 = sbr.rel (%p237) target = $region28
        $region27: #{cross_attention_layer.1} parent=23 // pred_region
          %s240 = sand.u32 %s32, 1
          %s241 = scalar_lea.sflag [#allocation3], %s240
          %s242 = sand.u32 %s32, 1
          %s243 = smul.addr %s242, 8
          %s244 = scalar_lea.vmem [#allocation2], %s243
          %s246 = ssub.s32 128, 128
          %247 = vsyncadd %s241, %s246
          %s248 = smul.addr %s22, 128
          %s249 = scalar_lea.hbm %s0, %s248
          %s251 = sshll.u32 %s244, 4
          %s252 = int_to_ptr.vmem [resolvable:$true] %s251
          %254 = dma.hbm_to_vmem [thread:$0]  %s249, 128, %s252, %s241
        $region28: #{cross_attention_layer.1} parent=23 // pred_fallthru
          _
        // Predicated region
        $region29: #{cross_attention_layer.1} parent=23 // pred_check
          %p255 = pneg %p68
        $region30: #{cross_attention_layer.1} parent=23 // pred_check_branch
          %257 = sbr.rel (%p255) target = $region32
        $region31: #{cross_attention_layer.1} parent=23 // pred_region
          %s258 = sand.u32 %s22, 1
          %s259 = scalar_lea.sflag [#allocation6], %s258
          %s260 = sand.u32 %s58, 1
          %s261 = smul.addr %s260, 16
          %s262 = scalar_lea.vmem [#allocation5], %s261
          %s264 = ssub.s32 256, 256
          %265 = vsyncadd %s259, %s264
          %s266 = smul.addr %s22, 2
          %s267 = smul.addr %s266, 128
          %s268 = scalar_lea.hbm %s1, %s267
          %s269 = sshll.u32 %s262, 4
          %s270 = int_to_ptr.vmem [resolvable:$true] %s269
          %275 = dma.hbm_to_vmem [thread:$0]  %s268, 256, %s270, %s259, 128, 128, 8
        $region32: #{cross_attention_layer.1} parent=23 // pred_fallthru
          _
        // Predicated region
        $region33: #{cross_attention_layer.1} parent=23 // pred_check
          %p276 = pneg %p94
        $region34: #{cross_attention_layer.1} parent=23 // pred_check_branch
          %278 = sbr.rel (%p276) target = $region36
        $region35: #{cross_attention_layer.1} parent=23 // pred_region
          %p279 = scmp.lt.s32.totalorder %s22, 1
          %s280 = scalar_select %p279, %s22, 1
          %s281 = smul.addr %s280, 8
          %s282 = scalar_lea.vmem %s2, %s281
        $region36: #{cross_attention_layer.1} parent=23 // pred_fallthru
          _
        // Predicated region
        $region37: #{cross_attention_layer.1} parent=23 // pred_check
          %p283 = pneg %p120
        $region38: #{cross_attention_layer.1} parent=23 // pred_check_branch
          %285 = sbr.rel (%p283) target = $region40
        $region39: #{cross_attention_layer.1} parent=23 // pred_region
          %s286 = sand.u32 %s22, 1
          %s287 = scalar_lea.sflag [#allocation6], %s286
          %s288 = sand.u32 %s110, 1
          %s289 = smul.addr %s288, 16
          %s290 = scalar_lea.vmem [#allocation7], %s289
          %s292 = ssub.s32 256, 256
          %293 = vsyncadd %s287, %s292
          %s294 = smul.addr %s22, 2
          %s295 = smul.addr %s294, 128
          %s296 = scalar_lea.hbm %s3, %s295
          %s297 = sshll.u32 %s290, 4
          %s298 = int_to_ptr.vmem [resolvable:$true] %s297
          %303 = dma.hbm_to_vmem [thread:$0]  %s296, 256, %s298, %s287, 128, 128, 8
        $region40: #{cross_attention_layer.1} parent=23 // pred_fallthru
          _
      $region24: #{cross_attention_layer.1} parent=5 // pred_fallthru
        _
      %p304 = scmp.le.s32.totalorder 1, %s22
      %p305 = scmp.lt.s32.totalorder %s22, 3
      %p306 = pnand %p304, %p305
      %p307 = pneg %p306
      // Predicated region
      $region41: #{cross_attention_layer.1} parent=5 // pred_check
        _
      $region42: #{cross_attention_layer.1} parent=5 // pred_check_branch
        %309 = sbr.rel (%p306) target = $region44
      $region43: #{cross_attention_layer.1} parent=5 // pred_region
        %s310 = ssub.s32 %s22, 1
        %s311 = sand.u32 %s35, 1
        %s312 = scalar_lea.sflag [#allocation3], %s311
        %s313 = sand.u32 %s35, 1
        %s314 = smul.addr %s313, 8
        %s315 = scalar_lea.vmem [#allocation2], %s314
        // Predicated region
        $region45: #{cross_attention_layer.1} parent=43 // pred_check
          %p316 = pneg %p48
        $region46: #{cross_attention_layer.1} parent=43 // pred_check_branch
          %318 = sbr.rel (%p316) target = $region48
        $region47: #{cross_attention_layer.1} parent=43 // pred_region
          %319 = dma.done %s312, 128
        $region48: #{cross_attention_layer.1} parent=43 // pred_fallthru
          _
        %s320 = sand.u32 %s27, 1
        %s321 = scalar_lea.sflag [#allocation6], %s320
        %s322 = sand.u32 %s61, 1
        %s323 = smul.addr %s322, 16
        %s324 = scalar_lea.vmem [#allocation5], %s323
        // Predicated region
        $region49: #{cross_attention_layer.1} parent=43 // pred_check
          %p325 = pneg %p74
        $region50: #{cross_attention_layer.1} parent=43 // pred_check_branch
          %327 = sbr.rel (%p325) target = $region52
        $region51: #{cross_attention_layer.1} parent=43 // pred_region
          %328 = dma.done %s321, 256
        $region52: #{cross_attention_layer.1} parent=43 // pred_fallthru
          _
        %s329 = sand.u32 %s27, 1
        %s330 = scalar_lea.sflag [#allocation6], %s329
        %s331 = sand.u32 %s113, 1
        %s332 = smul.addr %s331, 16
        %s333 = scalar_lea.vmem [#allocation7], %s332
        // Predicated region
        $region53: #{cross_attention_layer.1} parent=43 // pred_check
          %p334 = pneg %p126
        $region54: #{cross_attention_layer.1} parent=43 // pred_check_branch
          %336 = sbr.rel (%p334) target = $region56
        $region55: #{cross_attention_layer.1} parent=43 // pred_region
          %337 = dma.done %s330, 256
        $region56: #{cross_attention_layer.1} parent=43 // pred_fallthru
          _
        // Predicated region
        $region57: #{cross_attention_layer.1} parent=43 // pred_check
          %p338 = pneg %p147
        $region58: #{cross_attention_layer.1} parent=43 // pred_check_branch
          %340 = sbr.rel (%p338) target = $region60
        $region59: #{cross_attention_layer.1} parent=43 // pred_region
          %341 = dma.done [#allocation9], 2048
        $region60: #{cross_attention_layer.1} parent=43 // pred_fallthru
          _
        // Predicated region
        $region61: #{cross_attention_layer.1} parent=43 // pred_check
          %p342 = pneg %p168
        $region62: #{cross_attention_layer.1} parent=43 // pred_check_branch
          %344 = sbr.rel (%p342) target = $region64
        $region63: #{cross_attention_layer.1} parent=43 // pred_region
          %345 = dma.done [#allocation9], 128
        $region64: #{cross_attention_layer.1} parent=43 // pred_fallthru
          _
        %s346 = sand.u32 %s35, 1
        %s347 = scalar_lea.sflag [#allocation3], %s346
        %s348 = sand.u32 %s35, 1
        %s349 = smul.addr %s348, 8
        %s350 = scalar_lea.vmem [#allocation2], %s349
        %p351 = pneg %p48
        %p352 = pneg %p45
        %s353 = sand.u32 %s27, 1
        %s354 = scalar_lea.sflag [#allocation6], %s353
        %s355 = sand.u32 %s61, 1
        %s356 = smul.addr %s355, 16
        %s357 = scalar_lea.vmem [#allocation5], %s356
        %p358 = pneg %p74
        %p359 = pneg %p71
        %p360 = scmp.lt.s32.totalorder %s27, 1
        %s361 = scalar_select %p360, %s27, 1
        %s362 = smul.addr %s361, 8
        %s363 = scalar_lea.vmem %s2, %s362
        %p364 = pneg %p100
        %p365 = pneg %p97
        %s366 = sand.u32 %s27, 1
        %s367 = scalar_lea.sflag [#allocation6], %s366
        %s368 = sand.u32 %s113, 1
        %s369 = smul.addr %s368, 16
        %s370 = scalar_lea.vmem [#allocation7], %s369
        %p371 = pneg %p126
        %p372 = pneg %p123
        %p373 = pneg %p147
        %p374 = pneg %p144
        %p375 = pneg %p168
        %p376 = pneg %p165
        %p377 = pneg %p194
        %p378 = pneg %p191
        %s379 = sand.u32 %s181, 1
        %s380 = scalar_lea.sflag [#allocation4], %s379
        %s381 = sand.u32 %s181, 1
        %s382 = smul.addr %s381, 8
        %s383 = scalar_lea.vmem [#allocation11], %s382
        %p384 = scmp.lt.s32.totalorder %s27, 1
        %s385 = scalar_select %p384, %s27, 1
        %s386 = smul.addr %s385, 8
        %s387 = scalar_lea.vmem %s2, %s386
        %v388 = vld [vmem:[%s315] sm:$0xff]
        %v389 = vld [vmem:[%s324] sm:$0xff]
        %v390 = vld [vmem:[%s324 + $0x8] sm:$0xff]
        %v391 = vld [vmem:[%s387] sm:$0xff]
        %v392 = vadd.f32 %v388, %v391
        %v393 = vld [vmem:[%s333] sm:$0xff]
        %v394 = vld [vmem:[%s333 + $0x8] sm:$0xff]
        %v395 = vadd.f32 %v389, %v393
        %v396 = vadd.f32 %v390, %v394
        %v397 = vld [vmem:[#allocation8] sm:$0xff]
        %v398 = vld [vmem:[#allocation8 + $0x8] sm:$0xff]
        %v399 = vld [vmem:[#allocation8 + $0x10] sm:$0xff]
        %v400 = vld [vmem:[#allocation8 + $0x18] sm:$0xff]
        %s401 = scalar_lea.vmem [#allocation8], 32
        %v402 = vld [vmem:[%s401] sm:$0xff]
        %v403 = vld [vmem:[%s401 + $0x8] sm:$0xff]
        %v404 = vld [vmem:[%s401 + $0x10] sm:$0xff]
        %v405 = vld [vmem:[%s401 + $0x18] sm:$0xff]
        %s406 = scalar_lea.vmem [#allocation8], 64
        %v407 = vld [vmem:[%s406] sm:$0xff]
        %v408 = vld [vmem:[%s406 + $0x8] sm:$0xff]
        %v409 = vld [vmem:[%s406 + $0x10] sm:$0xff]
        %v410 = vld [vmem:[%s406 + $0x18] sm:$0xff]
        %s411 = scalar_lea.vmem [#allocation8], 96
        %v412 = vld [vmem:[%s411] sm:$0xff]
        %v413 = vld [vmem:[%s411 + $0x8] sm:$0xff]
        %v414 = vld [vmem:[%s411 + $0x10] sm:$0xff]
        %v415 = vld [vmem:[%s411 + $0x18] sm:$0xff]
        %v416 = vld [vmem:[#allocation10] sm:$0x1]
        %v417 = vld [vmem:[#allocation10 + $0x1] sm:$0x1]
        %v418 = vld [vmem:[#allocation10 + $0x2] sm:$0x1]
        %v419 = vld [vmem:[#allocation10 + $0x3] sm:$0x1]
        %v420 = vld [vmem:[#allocation10 + $0x4] sm:$0x1]
        %v421 = vld [vmem:[#allocation10 + $0x5] sm:$0x1]
        %v422 = vlaneseq
        %v423 = vshrl.u32 %v422, 7
        %v424 = vsub.s32 0, %v423
        %v425 = vrot.slane %v416, %v424
        %vm426 = vcmask 261120
        %v428 = vsel %vm426, %v392, 0
        %430 = vmatprep.subr.mxu0 0.0
        %431 = vmatpush1.msra.mxu0 %v397
        %432 = vmatprep.subr.mxu0 0.0
        %433 = vmatpush1.msra.mxu0 %v398
        %434 = vmatprep.subr.mxu0 0.0
        %435 = vmatpush1.msra.mxu0 %v399
        %436 = vmatprep.subr.mxu0 0.0
        %437 = vmatpush1.msra.mxu0 %v400
        %438 = vmatprep.subr.mxu0 0.0
        %439 = vmatpush1.msra.mxu0 0.0
        %440 = vmatprep.subr.mxu0 0.0
        %441 = vmatpush1.msra.mxu0 0.0
        %442 = vmatprep.subr.mxu0 0.0
        %443 = vmatpush1.msra.mxu0 0.0
        %444 = vmatprep.subr.mxu0 0.0
        %445 = vmatpush1.msra.mxu0 0.0
        %446 = vmatprep.subr.mxu0 0.0
        %447 = vmatpush1.msra.mxu0 0.0
        %448 = vmatprep.subr.mxu0 0.0
        %449 = vmatpush1.msra.mxu0 0.0
        %450 = vmatprep.subr.mxu0 0.0
        %451 = vmatpush1.msra.mxu0 0.0
        %452 = vmatprep.subr.mxu0 0.0
        %453 = vmatpush1.msra.mxu0 0.0
        %454 = vmatprep.subr.mxu0 0.0
        %455 = vmatpush1.msra.mxu0 0.0
        %456 = vmatprep.subr.mxu0 0.0
        %457 = vmatpush1.msra.mxu0 0.0
        %458 = vmatprep.subr.mxu0 0.0
        %459 = vmatpush1.msra.mxu0 0.0
        %460 = vmatprep.subr.mxu0 0.0
        %461 = vmatpush1.msra.mxu0 0.0
        %462 = vmatprep.subr.mxu0 0.0
        %463 = vmatpush1.msra.mxu0 0.0
        %464 = vmatprep.subr.mxu0 0.0
        %465 = vmatpush1.msra.mxu0 0.0
        %466 = vmatprep.subr.mxu0 0.0
        %467 = vmatpush1.msra.mxu0 0.0
        %468 = vmatprep.subr.mxu0 0.0
        %469 = vmatpush1.msra.mxu0 0.0
        %470 = vmatprep.subr.mxu0 0.0
        %471 = vmatpush1.msra.mxu0 0.0
        %472 = vmatprep.subr.mxu0 0.0
        %473 = vmatpush1.msra.mxu0 0.0
        %474 = vmatprep.subr.mxu0 0.0
        %475 = vmatpush1.msra.mxu0 0.0
        %476 = vmatprep.subr.mxu0 0.0
        %477 = vmatpush1.msra.mxu0 0.0
        %478 = vmatprep.subr.mxu0 0.0
        %479 = vmatpush1.msra.mxu0 0.0
        %480 = vmatprep.subr.mxu0 0.0
        %481 = vmatpush1.msra.mxu0 0.0
        %482 = vmatprep.subr.mxu0 0.0
        %483 = vmatpush1.msra.mxu0 0.0
        %484 = vmatprep.subr.mxu0 0.0
        %485 = vmatpush1.msra.mxu0 0.0
        %486 = vmatprep.subr.mxu0 0.0
        %487 = vmatpush1.msra.mxu0 0.0
        %488 = vmatprep.subr.mxu0 0.0
        %489 = vmatpush1.msra.mxu0 0.0
        %490 = vmatprep.subr.mxu0 0.0
        %491 = vmatpush1.msra.mxu0 0.0
        %492 = vmatprep.subr.mxu0 0.0
        %493 = vmatpush1.msra.mxu0 0.0
        %494 = vmatprep.mubr.f32.mxu0 0.0
        %495 = vmatmul.mubr.f32.gmra.mrb[0].mxu0 %v428
        %v496 = vpop.f32.mrb[0].mxu0
        %v497 = vadd.f32 %v425, %v496
        %v498 = vpop.f32.mrb[0].mxu0
        %499 = vdwg.mxu0
        %v500 = vlaneseq
        %v501 = vshrl.u32 %v500, 7
        %v502 = vsub.s32 0, %v501
        %v503 = vrot.slane %v417, %v502
        %v505 = vsel %vm426, %v395, 0
        %v508 = vsel %vm426, %v396, 0
        %510 = vmatprep.subr.mxu0 0.0
        %511 = vmatpush1.msra.mxu0 %v402
        %512 = vmatprep.subr.mxu0 0.0
        %513 = vmatpush1.msra.mxu0 %v403
        %514 = vmatprep.subr.mxu0 0.0
        %515 = vmatpush1.msra.mxu0 %v404
        %516 = vmatprep.subr.mxu0 0.0
        %517 = vmatpush1.msra.mxu0 %v405
        %518 = vmatprep.subr.mxu0 0.0
        %519 = vmatpush1.msra.mxu0 0.0
        %520 = vmatprep.subr.mxu0 0.0
        %521 = vmatpush1.msra.mxu0 0.0
        %522 = vmatprep.subr.mxu0 0.0
        %523 = vmatpush1.msra.mxu0 0.0
        %524 = vmatprep.subr.mxu0 0.0
        %525 = vmatpush1.msra.mxu0 0.0
        %526 = vmatprep.subr.mxu0 0.0
        %527 = vmatpush1.msra.mxu0 0.0
        %528 = vmatprep.subr.mxu0 0.0
        %529 = vmatpush1.msra.mxu0 0.0
        %530 = vmatprep.subr.mxu0 0.0
        %531 = vmatpush1.msra.mxu0 0.0
        %532 = vmatprep.subr.mxu0 0.0
        %533 = vmatpush1.msra.mxu0 0.0
        %534 = vmatprep.subr.mxu0 0.0
        %535 = vmatpush1.msra.mxu0 0.0
        %536 = vmatprep.subr.mxu0 0.0
        %537 = vmatpush1.msra.mxu0 0.0
        %538 = vmatprep.subr.mxu0 0.0
        %539 = vmatpush1.msra.mxu0 0.0
        %540 = vmatprep.subr.mxu0 0.0
        %541 = vmatpush1.msra.mxu0 0.0
        %542 = vmatprep.subr.mxu0 0.0
        %543 = vmatpush1.msra.mxu0 0.0
        %544 = vmatprep.subr.mxu0 0.0
        %545 = vmatpush1.msra.mxu0 0.0
        %546 = vmatprep.subr.mxu0 0.0
        %547 = vmatpush1.msra.mxu0 0.0
        %548 = vmatprep.subr.mxu0 0.0
        %549 = vmatpush1.msra.mxu0 0.0
        %550 = vmatprep.subr.mxu0 0.0
        %551 = vmatpush1.msra.mxu0 0.0
        %552 = vmatprep.subr.mxu0 0.0
        %553 = vmatpush1.msra.mxu0 0.0
        %554 = vmatprep.subr.mxu0 0.0
        %555 = vmatpush1.msra.mxu0 0.0
        %556 = vmatprep.subr.mxu0 0.0
        %557 = vmatpush1.msra.mxu0 0.0
        %558 = vmatprep.subr.mxu0 0.0
        %559 = vmatpush1.msra.mxu0 0.0
        %560 = vmatprep.subr.mxu0 0.0
        %561 = vmatpush1.msra.mxu0 0.0
        %562 = vmatprep.subr.mxu0 0.0
        %563 = vmatpush1.msra.mxu0 0.0
        %564 = vmatprep.subr.mxu0 0.0
        %565 = vmatpush1.msra.mxu0 0.0
        %566 = vmatprep.subr.mxu0 0.0
        %567 = vmatpush1.msra.mxu0 0.0
        %568 = vmatprep.subr.mxu0 0.0
        %569 = vmatpush1.msra.mxu0 0.0
        %570 = vmatprep.subr.mxu0 0.0
        %571 = vmatpush1.msra.mxu0 0.0
        %572 = vmatprep.subr.mxu0 0.0
        %573 = vmatpush1.msra.mxu0 0.0
        %574 = vmatprep.mubr.f32.mxu0 0.0
        %575 = vmatmul.mubr.f32.gmra.mrb[0].mxu0 %v505
        %v576 = vpop.f32.mrb[0].mxu0
        %v577 = vadd.f32 %v503, %v576
        %v578 = vpop.f32.mrb[0].mxu0
        %579 = vmatprep.mubr.f32.mxu0 0.0
        %580 = vmatmul.mubr.f32.gmra.mrb[0].mxu0 %v508
        %v581 = vpop.f32.mrb[0].mxu0
        %v582 = vadd.f32 %v503, %v581
        %v583 = vpop.f32.mrb[0].mxu0
        %584 = vdwg.mxu0
        %v585 = vlaneseq
        %v586 = vshrl.u32 %v585, 7
        %v587 = vsub.s32 0, %v586
        %v588 = vrot.slane %v418, %v587
        %v590 = vsel %vm426, %v389, 0
        %v593 = vsel %vm426, %v390, 0
        %595 = vmatprep.subr.mxu0 0.0
        %596 = vmatpush1.msra.mxu0 %v407
        %597 = vmatprep.subr.mxu0 0.0
        %598 = vmatpush1.msra.mxu0 %v408
        %599 = vmatprep.subr.mxu0 0.0
        %600 = vmatpush1.msra.mxu0 %v409
        %601 = vmatprep.subr.mxu0 0.0
        %602 = vmatpush1.msra.mxu0 %v410
        %603 = vmatprep.subr.mxu0 0.0
        %604 = vmatpush1.msra.mxu0 0.0
        %605 = vmatprep.subr.mxu0 0.0
        %606 = vmatpush1.msra.mxu0 0.0
        %607 = vmatprep.subr.mxu0 0.0
        %608 = vmatpush1.msra.mxu0 0.0
        %609 = vmatprep.subr.mxu0 0.0
        %610 = vmatpush1.msra.mxu0 0.0
        %611 = vmatprep.subr.mxu0 0.0
        %612 = vmatpush1.msra.mxu0 0.0
        %613 = vmatprep.subr.mxu0 0.0
        %614 = vmatpush1.msra.mxu0 0.0
        %615 = vmatprep.subr.mxu0 0.0
        %616 = vmatpush1.msra.mxu0 0.0
        %617 = vmatprep.subr.mxu0 0.0
        %618 = vmatpush1.msra.mxu0 0.0
        %619 = vmatprep.subr.mxu0 0.0
        %620 = vmatpush1.msra.mxu0 0.0
        %621 = vmatprep.subr.mxu0 0.0
        %622 = vmatpush1.msra.mxu0 0.0
        %623 = vmatprep.subr.mxu0 0.0
        %624 = vmatpush1.msra.mxu0 0.0
        %625 = vmatprep.subr.mxu0 0.0
        %626 = vmatpush1.msra.mxu0 0.0
        %627 = vmatprep.subr.mxu0 0.0
        %628 = vmatpush1.msra.mxu0 0.0
        %629 = vmatprep.subr.mxu0 0.0
        %630 = vmatpush1.msra.mxu0 0.0
        %631 = vmatprep.subr.mxu0 0.0
        %632 = vmatpush1.msra.mxu0 0.0
        %633 = vmatprep.subr.mxu0 0.0
        %634 = vmatpush1.msra.mxu0 0.0
        %635 = vmatprep.subr.mxu0 0.0
        %636 = vmatpush1.msra.mxu0 0.0
        %637 = vmatprep.subr.mxu0 0.0
        %638 = vmatpush1.msra.mxu0 0.0
        %639 = vmatprep.subr.mxu0 0.0
        %640 = vmatpush1.msra.mxu0 0.0
        %641 = vmatprep.subr.mxu0 0.0
        %642 = vmatpush1.msra.mxu0 0.0
        %643 = vmatprep.subr.mxu0 0.0
        %644 = vmatpush1.msra.mxu0 0.0
        %645 = vmatprep.subr.mxu0 0.0
        %646 = vmatpush1.msra.mxu0 0.0
        %647 = vmatprep.subr.mxu0 0.0
        %648 = vmatpush1.msra.mxu0 0.0
        %649 = vmatprep.subr.mxu0 0.0
        %650 = vmatpush1.msra.mxu0 0.0
        %651 = vmatprep.subr.mxu0 0.0
        %652 = vmatpush1.msra.mxu0 0.0
        %653 = vmatprep.subr.mxu0 0.0
        %654 = vmatpush1.msra.mxu0 0.0
        %655 = vmatprep.subr.mxu0 0.0
        %656 = vmatpush1.msra.mxu0 0.0
        %657 = vmatprep.subr.mxu0 0.0
        %658 = vmatpush1.msra.mxu0 0.0
        %659 = vmatprep.mubr.f32.mxu0 0.0
        %660 = vmatmul.mubr.f32.gmra.mrb[0].mxu0 %v590
        %v661 = vpop.f32.mrb[0].mxu0
        %v662 = vadd.f32 %v588, %v661
        %v663 = vpop.f32.mrb[0].mxu0
        %664 = vmatprep.mubr.f32.mxu0 0.0
        %665 = vmatmul.mubr.f32.gmra.mrb[0].mxu0 %v593
        %v666 = vpop.f32.mrb[0].mxu0
        %v667 = vadd.f32 %v588, %v666
        %v668 = vpop.f32.mrb[0].mxu0
        %669 = vdwg.mxu0
        %671 = vrot.lane.b32.xlu0 %v497, 120
        %v672 = vpop.permute.xlu0 %671
        %673 = vrot.lane.b32.xlu0 %v497, 112
        %v674 = vpop.permute.xlu0 %673
        %675 = vrot.lane.b32.xlu0 %v497, 104
        %v676 = vpop.permute.xlu0 %675
        %679 = vrot.lane.b32.xlu0 %v577, 120
        %v680 = vpop.permute.xlu0 %679
        %681 = vrot.lane.b32.xlu0 %v582, 120
        %v682 = vpop.permute.xlu0 %681
        %683 = vrot.lane.b32.xlu0 %v577, 112
        %v684 = vpop.permute.xlu0 %683
        %685 = vrot.lane.b32.xlu0 %v582, 112
        %v686 = vpop.permute.xlu0 %685
        %687 = vrot.lane.b32.xlu0 %v577, 104
        %v688 = vpop.permute.xlu0 %687
        %689 = vrot.lane.b32.xlu0 %v582, 104
        %v690 = vpop.permute.xlu0 %689
        %693 = vrot.lane.b32.xlu0 %v662, 120
        %v694 = vpop.permute.xlu0 %693
        %695 = vrot.lane.b32.xlu0 %v667, 120
        %v696 = vpop.permute.xlu0 %695
        %699 = vrot.lane.b32.xlu0 %v662, 112
        %v700 = vpop.permute.xlu0 %699
        %701 = vrot.lane.b32.xlu0 %v667, 112
        %v702 = vpop.permute.xlu0 %701
        %705 = vrot.lane.b32.xlu0 %v662, 104
        %v706 = vpop.permute.xlu0 %705
        %707 = vrot.lane.b32.xlu0 %v667, 104
        %v708 = vpop.permute.xlu0 %707
        %vm711 = vcmask 64512
        %v712 = vsel %vm711, %v497, 0
        %v714 = vsel %vm711, %v577, 0
        %v716 = vsel %vm711, %v582, 0
        %718 = vmatprep.subr.mxu0 0.0
        %719 = vmatpush1.xpose.msra.mxu0 %v714
        %720 = vmatprep.subr.mxu0 0.0
        %721 = vmatpush1.xpose.msra.mxu0 %v716
        %722 = vmatprep.subr.mxu0 0.0
        %723 = vmatpush1.xpose.msra.mxu0 0.0
        %724 = vmatprep.subr.mxu0 0.0
        %725 = vmatpush1.xpose.msra.mxu0 0.0
        %726 = vmatprep.subr.mxu0 0.0
        %727 = vmatpush1.xpose.msra.mxu0 0.0
        %728 = vmatprep.subr.mxu0 0.0
        %729 = vmatpush1.xpose.msra.mxu0 0.0
        %730 = vmatprep.subr.mxu0 0.0
        %731 = vmatpush1.xpose.msra.mxu0 0.0
        %732 = vmatprep.subr.mxu0 0.0
        %733 = vmatpush1.xpose.msra.mxu0 0.0
        %734 = vmatprep.subr.mxu0 0.0
        %735 = vmatpush1.xpose.msra.mxu0 0.0
        %736 = vmatprep.subr.mxu0 0.0
        %737 = vmatpush1.xpose.msra.mxu0 0.0
        %738 = vmatprep.subr.mxu0 0.0
        %739 = vmatpush1.xpose.msra.mxu0 0.0
        %740 = vmatprep.subr.mxu0 0.0
        %741 = vmatpush1.xpose.msra.mxu0 0.0
        %742 = vmatprep.subr.mxu0 0.0
        %743 = vmatpush1.xpose.msra.mxu0 0.0
        %744 = vmatprep.subr.mxu0 0.0
        %745 = vmatpush1.xpose.msra.mxu0 0.0
        %746 = vmatprep.subr.mxu0 0.0
        %747 = vmatpush1.xpose.msra.mxu0 0.0
        %748 = vmatprep.subr.mxu0 0.0
        %749 = vmatpush1.xpose.msra.mxu0 0.0
        %750 = vmatprep.subr.mxu0 0.0
        %751 = vmatpush1.xpose.msra.mxu0 0.0
        %752 = vmatprep.subr.mxu0 0.0
        %753 = vmatpush1.xpose.msra.mxu0 0.0
        %754 = vmatprep.subr.mxu0 0.0
        %755 = vmatpush1.xpose.msra.mxu0 0.0
        %756 = vmatprep.subr.mxu0 0.0
        %757 = vmatpush1.xpose.msra.mxu0 0.0
        %758 = vmatprep.subr.mxu0 0.0
        %759 = vmatpush1.xpose.msra.mxu0 0.0
        %760 = vmatprep.subr.mxu0 0.0
        %761 = vmatpush1.xpose.msra.mxu0 0.0
        %762 = vmatprep.subr.mxu0 0.0
        %763 = vmatpush1.xpose.msra.mxu0 0.0
        %764 = vmatprep.subr.mxu0 0.0
        %765 = vmatpush1.xpose.msra.mxu0 0.0
        %766 = vmatprep.subr.mxu0 0.0
        %767 = vmatpush1.xpose.msra.mxu0 0.0
        %768 = vmatprep.subr.mxu0 0.0
        %769 = vmatpush1.xpose.msra.mxu0 0.0
        %770 = vmatprep.subr.mxu0 0.0
        %771 = vmatpush1.xpose.msra.mxu0 0.0
        %772 = vmatprep.subr.mxu0 0.0
        %773 = vmatpush1.xpose.msra.mxu0 0.0
        %774 = vmatprep.subr.mxu0 0.0
        %775 = vmatpush1.xpose.msra.mxu0 0.0
        %776 = vmatprep.subr.mxu0 0.0
        %777 = vmatpush1.xpose.msra.mxu0 0.0
        %778 = vmatprep.subr.mxu0 0.0
        %779 = vmatpush1.xpose.msra.mxu0 0.0
        %780 = vmatprep.subr.mxu0 0.0
        %781 = vmatpush1.xpose.msra.mxu0 0.0
        %782 = vmatprep.mubr.f32.mxu0 0.0
        %783 = vmatmul.mubr.f32.gmra.mrb[0].mxu0 %v712
        %v784 = vpop.f32.mrb[0].mxu0
        %v785 = vadd.f32 0.0, %v784
        %v786 = vpop.f32.mrb[0].mxu0
        %787 = vdwg.mxu0
        %v788 = vsel %vm711, %v672, 0
        %v790 = vsel %vm711, %v680, 0
        %v792 = vsel %vm711, %v682, 0
        %794 = vmatprep.subr.mxu0 0.0
        %795 = vmatpush1.xpose.msra.mxu0 %v790
        %796 = vmatprep.subr.mxu0 0.0
        %797 = vmatpush1.xpose.msra.mxu0 %v792
        %798 = vmatprep.subr.mxu0 0.0
        %799 = vmatpush1.xpose.msra.mxu0 0.0
        %800 = vmatprep.subr.mxu0 0.0
        %801 = vmatpush1.xpose.msra.mxu0 0.0
        %802 = vmatprep.subr.mxu0 0.0
        %803 = vmatpush1.xpose.msra.mxu0 0.0
        %804 = vmatprep.subr.mxu0 0.0
        %805 = vmatpush1.xpose.msra.mxu0 0.0
        %806 = vmatprep.subr.mxu0 0.0
        %807 = vmatpush1.xpose.msra.mxu0 0.0
        %808 = vmatprep.subr.mxu0 0.0
        %809 = vmatpush1.xpose.msra.mxu0 0.0
        %810 = vmatprep.subr.mxu0 0.0
        %811 = vmatpush1.xpose.msra.mxu0 0.0
        %812 = vmatprep.subr.mxu0 0.0
        %813 = vmatpush1.xpose.msra.mxu0 0.0
        %814 = vmatprep.subr.mxu0 0.0
        %815 = vmatpush1.xpose.msra.mxu0 0.0
        %816 = vmatprep.subr.mxu0 0.0
        %817 = vmatpush1.xpose.msra.mxu0 0.0
        %818 = vmatprep.subr.mxu0 0.0
        %819 = vmatpush1.xpose.msra.mxu0 0.0
        %820 = vmatprep.subr.mxu0 0.0
        %821 = vmatpush1.xpose.msra.mxu0 0.0
        %822 = vmatprep.subr.mxu0 0.0
        %823 = vmatpush1.xpose.msra.mxu0 0.0
        %824 = vmatprep.subr.mxu0 0.0
        %825 = vmatpush1.xpose.msra.mxu0 0.0
        %826 = vmatprep.subr.mxu0 0.0
        %827 = vmatpush1.xpose.msra.mxu0 0.0
        %828 = vmatprep.subr.mxu0 0.0
        %829 = vmatpush1.xpose.msra.mxu0 0.0
        %830 = vmatprep.subr.mxu0 0.0
        %831 = vmatpush1.xpose.msra.mxu0 0.0
        %832 = vmatprep.subr.mxu0 0.0
        %833 = vmatpush1.xpose.msra.mxu0 0.0
        %834 = vmatprep.subr.mxu0 0.0
        %835 = vmatpush1.xpose.msra.mxu0 0.0
        %836 = vmatprep.subr.mxu0 0.0
        %837 = vmatpush1.xpose.msra.mxu0 0.0
        %838 = vmatprep.subr.mxu0 0.0
        %839 = vmatpush1.xpose.msra.mxu0 0.0
        %840 = vmatprep.subr.mxu0 0.0
        %841 = vmatpush1.xpose.msra.mxu0 0.0
        %842 = vmatprep.subr.mxu0 0.0
        %843 = vmatpush1.xpose.msra.mxu0 0.0
        %844 = vmatprep.subr.mxu0 0.0
        %845 = vmatpush1.xpose.msra.mxu0 0.0
        %846 = vmatprep.subr.mxu0 0.0
        %847 = vmatpush1.xpose.msra.mxu0 0.0
        %848 = vmatprep.subr.mxu0 0.0
        %849 = vmatpush1.xpose.msra.mxu0 0.0
        %850 = vmatprep.subr.mxu0 0.0
        %851 = vmatpush1.xpose.msra.mxu0 0.0
        %852 = vmatprep.subr.mxu0 0.0
        %853 = vmatpush1.xpose.msra.mxu0 0.0
        %854 = vmatprep.subr.mxu0 0.0
        %855 = vmatpush1.xpose.msra.mxu0 0.0
        %856 = vmatprep.subr.mxu0 0.0
        %857 = vmatpush1.xpose.msra.mxu0 0.0
        %858 = vmatprep.mubr.f32.mxu0 0.0
        %859 = vmatmul.mubr.f32.gmra.mrb[0].mxu0 %v788
        %v860 = vpop.f32.mrb[0].mxu0
        %v861 = vadd.f32 0.0, %v860
        %v862 = vpop.f32.mrb[0].mxu0
        %863 = vdwg.mxu0
        %v864 = vsel %vm711, %v674, 0
        %v866 = vsel %vm711, %v684, 0
        %v868 = vsel %vm711, %v686, 0
        %870 = vmatprep.subr.mxu0 0.0
        %871 = vmatpush1.xpose.msra.mxu0 %v866
        %872 = vmatprep.subr.mxu0 0.0
        %873 = vmatpush1.xpose.msra.mxu0 %v868
        %874 = vmatprep.subr.mxu0 0.0
        %875 = vmatpush1.xpose.msra.mxu0 0.0
        %876 = vmatprep.subr.mxu0 0.0
        %877 = vmatpush1.xpose.msra.mxu0 0.0
        %878 = vmatprep.subr.mxu0 0.0
        %879 = vmatpush1.xpose.msra.mxu0 0.0
        %880 = vmatprep.subr.mxu0 0.0
        %881 = vmatpush1.xpose.msra.mxu0 0.0
        %882 = vmatprep.subr.mxu0 0.0
        %883 = vmatpush1.xpose.msra.mxu0 0.0
        %884 = vmatprep.subr.mxu0 0.0
        %885 = vmatpush1.xpose.msra.mxu0 0.0
        %886 = vmatprep.subr.mxu0 0.0
        %887 = vmatpush1.xpose.msra.mxu0 0.0
        %888 = vmatprep.subr.mxu0 0.0
        %889 = vmatpush1.xpose.msra.mxu0 0.0
        %890 = vmatprep.subr.mxu0 0.0
        %891 = vmatpush1.xpose.msra.mxu0 0.0
        %892 = vmatprep.subr.mxu0 0.0
        %893 = vmatpush1.xpose.msra.mxu0 0.0
        %894 = vmatprep.subr.mxu0 0.0
        %895 = vmatpush1.xpose.msra.mxu0 0.0
        %896 = vmatprep.subr.mxu0 0.0
        %897 = vmatpush1.xpose.msra.mxu0 0.0
        %898 = vmatprep.subr.mxu0 0.0
        %899 = vmatpush1.xpose.msra.mxu0 0.0
        %900 = vmatprep.subr.mxu0 0.0
        %901 = vmatpush1.xpose.msra.mxu0 0.0
        %902 = vmatprep.subr.mxu0 0.0
        %903 = vmatpush1.xpose.msra.mxu0 0.0
        %904 = vmatprep.subr.mxu0 0.0
        %905 = vmatpush1.xpose.msra.mxu0 0.0
        %906 = vmatprep.subr.mxu0 0.0
        %907 = vmatpush1.xpose.msra.mxu0 0.0
        %908 = vmatprep.subr.mxu0 0.0
        %909 = vmatpush1.xpose.msra.mxu0 0.0
        %910 = vmatprep.subr.mxu0 0.0
        %911 = vmatpush1.xpose.msra.mxu0 0.0
        %912 = vmatprep.subr.mxu0 0.0
        %913 = vmatpush1.xpose.msra.mxu0 0.0
        %914 = vmatprep.subr.mxu0 0.0
        %915 = vmatpush1.xpose.msra.mxu0 0.0
        %916 = vmatprep.subr.mxu0 0.0
        %917 = vmatpush1.xpose.msra.mxu0 0.0
        %918 = vmatprep.subr.mxu0 0.0
        %919 = vmatpush1.xpose.msra.mxu0 0.0
        %920 = vmatprep.subr.mxu0 0.0
        %921 = vmatpush1.xpose.msra.mxu0 0.0
        %922 = vmatprep.subr.mxu0 0.0
        %923 = vmatpush1.xpose.msra.mxu0 0.0
        %924 = vmatprep.subr.mxu0 0.0
        %925 = vmatpush1.xpose.msra.mxu0 0.0
        %926 = vmatprep.subr.mxu0 0.0
        %927 = vmatpush1.xpose.msra.mxu0 0.0
        %928 = vmatprep.subr.mxu0 0.0
        %929 = vmatpush1.xpose.msra.mxu0 0.0
        %930 = vmatprep.subr.mxu0 0.0
        %931 = vmatpush1.xpose.msra.mxu0 0.0
        %932 = vmatprep.subr.mxu0 0.0
        %933 = vmatpush1.xpose.msra.mxu0 0.0
        %934 = vmatprep.mubr.f32.mxu0 0.0
        %935 = vmatmul.mubr.f32.gmra.mrb[0].mxu0 %v864
        %v936 = vpop.f32.mrb[0].mxu0
        %v937 = vadd.f32 0.0, %v936
        %v938 = vpop.f32.mrb[0].mxu0
        %939 = vdwg.mxu0
        %v940 = vsel %vm711, %v676, 0
        %v942 = vsel %vm711, %v688, 0
        %v944 = vsel %vm711, %v690, 0
        %946 = vmatprep.subr.mxu0 0.0
        %947 = vmatpush1.xpose.msra.mxu0 %v942
        %948 = vmatprep.subr.mxu0 0.0
        %949 = vmatpush1.xpose.msra.mxu0 %v944
        %950 = vmatprep.subr.mxu0 0.0
        %951 = vmatpush1.xpose.msra.mxu0 0.0
        %952 = vmatprep.subr.mxu0 0.0
        %953 = vmatpush1.xpose.msra.mxu0 0.0
        %954 = vmatprep.subr.mxu0 0.0
        %955 = vmatpush1.xpose.msra.mxu0 0.0
        %956 = vmatprep.subr.mxu0 0.0
        %957 = vmatpush1.xpose.msra.mxu0 0.0
        %958 = vmatprep.subr.mxu0 0.0
        %959 = vmatpush1.xpose.msra.mxu0 0.0
        %960 = vmatprep.subr.mxu0 0.0
        %961 = vmatpush1.xpose.msra.mxu0 0.0
        %962 = vmatprep.subr.mxu0 0.0
        %963 = vmatpush1.xpose.msra.mxu0 0.0
        %964 = vmatprep.subr.mxu0 0.0
        %965 = vmatpush1.xpose.msra.mxu0 0.0
        %966 = vmatprep.subr.mxu0 0.0
        %967 = vmatpush1.xpose.msra.mxu0 0.0
        %968 = vmatprep.subr.mxu0 0.0
        %969 = vmatpush1.xpose.msra.mxu0 0.0
        %970 = vmatprep.subr.mxu0 0.0
        %971 = vmatpush1.xpose.msra.mxu0 0.0
        %972 = vmatprep.subr.mxu0 0.0
        %973 = vmatpush1.xpose.msra.mxu0 0.0
        %974 = vmatprep.subr.mxu0 0.0
        %975 = vmatpush1.xpose.msra.mxu0 0.0
        %976 = vmatprep.subr.mxu0 0.0
        %977 = vmatpush1.xpose.msra.mxu0 0.0
        %978 = vmatprep.subr.mxu0 0.0
        %979 = vmatpush1.xpose.msra.mxu0 0.0
        %980 = vmatprep.subr.mxu0 0.0
        %981 = vmatpush1.xpose.msra.mxu0 0.0
        %982 = vmatprep.subr.mxu0 0.0
        %983 = vmatpush1.xpose.msra.mxu0 0.0
        %984 = vmatprep.subr.mxu0 0.0
        %985 = vmatpush1.xpose.msra.mxu0 0.0
        %986 = vmatprep.subr.mxu0 0.0
        %987 = vmatpush1.xpose.msra.mxu0 0.0
        %988 = vmatprep.subr.mxu0 0.0
        %989 = vmatpush1.xpose.msra.mxu0 0.0
        %990 = vmatprep.subr.mxu0 0.0
        %991 = vmatpush1.xpose.msra.mxu0 0.0
        %992 = vmatprep.subr.mxu0 0.0
        %993 = vmatpush1.xpose.msra.mxu0 0.0
        %994 = vmatprep.subr.mxu0 0.0
        %995 = vmatpush1.xpose.msra.mxu0 0.0
        %996 = vmatprep.subr.mxu0 0.0
        %997 = vmatpush1.xpose.msra.mxu0 0.0
        %998 = vmatprep.subr.mxu0 0.0
        %999 = vmatpush1.xpose.msra.mxu0 0.0
        %1000 = vmatprep.subr.mxu0 0.0
        %1001 = vmatpush1.xpose.msra.mxu0 0.0
        %1002 = vmatprep.subr.mxu0 0.0
        %1003 = vmatpush1.xpose.msra.mxu0 0.0
        %1004 = vmatprep.subr.mxu0 0.0
        %1005 = vmatpush1.xpose.msra.mxu0 0.0
        %1006 = vmatprep.subr.mxu0 0.0
        %1007 = vmatpush1.xpose.msra.mxu0 0.0
        %1008 = vmatprep.subr.mxu0 0.0
        %1009 = vmatpush1.xpose.msra.mxu0 0.0
        %1010 = vmatprep.mubr.f32.mxu0 0.0
        %1011 = vmatmul.mubr.f32.gmra.mrb[0].mxu0 %v940
        %v1012 = vpop.f32.mrb[0].mxu0
        %v1013 = vadd.f32 0.0, %v1012
        %v1014 = vpop.f32.mrb[0].mxu0
        %1015 = vdwg.mxu0
        %vm1016 = vcmask 130048
        %v1017 = vsel %vm1016, %v785, -inf
        %1018 = vmax.xlane.f32.xlu0 %v1017
        %v1019 = vpop.xlane.xlu0 %1018
        %v1020 = vsel %vm1016, %v861, -inf
        %1021 = vmax.xlane.f32.xlu0 %v1020
        %v1022 = vpop.xlane.xlu0 %1021
        %v1023 = vsel %vm1016, %v937, -inf
        %1024 = vmax.xlane.f32.xlu0 %v1023
        %v1025 = vpop.xlane.xlu0 %1024
        %v1026 = vsel %vm1016, %v1013, -inf
        %1027 = vmax.xlane.f32.xlu0 %v1026
        %v1028 = vpop.xlane.xlu0 %1027
        %v1029 = vsub.f32 %v785, %v1019
        %v1030 = vsub.f32 %v861, %v1022
        %v1031 = vsub.f32 %v937, %v1025
        %v1032 = vsub.f32 %v1013, %v1028
        %v1033 = vmul.f32 %v1029, 1.442695
        %v1034 = vpow.pop %v1033
        %v1035 = vmul.f32 %v1030, 1.442695
        %v1036 = vpow.pop %v1035
        %v1037 = vmul.f32 %v1031, 1.442695
        %v1038 = vpow.pop %v1037
        %v1039 = vmul.f32 %v1032, 1.442695
        %v1040 = vpow.pop %v1039
        %v1041 = vsel %vm1016, %v1034, 0.0
        %1042 = vadd.xlane.f32.xlu0 %v1041
        %v1043 = vpop.xlane.xlu0 %1042
        %v1044 = vsel %vm1016, %v1036, 0.0
        %1045 = vadd.xlane.f32.xlu0 %v1044
        %v1046 = vpop.xlane.xlu0 %1045
        %v1047 = vsel %vm1016, %v1038, 0.0
        %1048 = vadd.xlane.f32.xlu0 %v1047
        %v1049 = vpop.xlane.xlu0 %1048
        %v1050 = vsel %vm1016, %v1040, 0.0
        %1051 = vadd.xlane.f32.xlu0 %v1050
        %v1052 = vpop.xlane.xlu0 %1051
        %v1053 = vrcp.pop %v1043
        %v1054 = vrcp.pop %v1046
        %v1055 = vrcp.pop %v1049
        %v1056 = vrcp.pop %v1052
        %v1057 = vmul.f32 %v1034, %v1053
        %v1058 = vmul.f32 %v1036, %v1054
        %v1059 = vmul.f32 %v1038, %v1055
        %v1060 = vmul.f32 %v1040, %v1056
        %v1062 = vsel %vm1016, %v1057, 0
        %1064 = vmatprep.subr.mxu0 0.0
        %1065 = vmatpush1.msra.mxu0 %v662
        %1066 = vmatprep.subr.mxu0 0.0
        %1067 = vmatpush1.msra.mxu0 %v667
        %1068 = vmatprep.subr.mxu0 0.0
        %1069 = vmatpush1.msra.mxu0 0.0
        %1070 = vmatprep.subr.mxu0 0.0
        %1071 = vmatpush1.msra.mxu0 0.0
        %1072 = vmatprep.subr.mxu0 0.0
        %1073 = vmatpush1.msra.mxu0 0.0
        %1074 = vmatprep.subr.mxu0 0.0
        %1075 = vmatpush1.msra.mxu0 0.0
        %1076 = vmatprep.subr.mxu0 0.0
        %1077 = vmatpush1.msra.mxu0 0.0
        %1078 = vmatprep.subr.mxu0 0.0
        %1079 = vmatpush1.msra.mxu0 0.0
        %1080 = vmatprep.subr.mxu0 0.0
        %1081 = vmatpush1.msra.mxu0 0.0
        %1082 = vmatprep.subr.mxu0 0.0
        %1083 = vmatpush1.msra.mxu0 0.0
        %1084 = vmatprep.subr.mxu0 0.0
        %1085 = vmatpush1.msra.mxu0 0.0
        %1086 = vmatprep.subr.mxu0 0.0
        %1087 = vmatpush1.msra.mxu0 0.0
        %1088 = vmatprep.subr.mxu0 0.0
        %1089 = vmatpush1.msra.mxu0 0.0
        %1090 = vmatprep.subr.mxu0 0.0
        %1091 = vmatpush1.msra.mxu0 0.0
        %1092 = vmatprep.subr.mxu0 0.0
        %1093 = vmatpush1.msra.mxu0 0.0
        %1094 = vmatprep.subr.mxu0 0.0
        %1095 = vmatpush1.msra.mxu0 0.0
        %1096 = vmatprep.subr.mxu0 0.0
        %1097 = vmatpush1.msra.mxu0 0.0
        %1098 = vmatprep.subr.mxu0 0.0
        %1099 = vmatpush1.msra.mxu0 0.0
        %1100 = vmatprep.subr.mxu0 0.0
        %1101 = vmatpush1.msra.mxu0 0.0
        %1102 = vmatprep.subr.mxu0 0.0
        %1103 = vmatpush1.msra.mxu0 0.0
        %1104 = vmatprep.subr.mxu0 0.0
        %1105 = vmatpush1.msra.mxu0 0.0
        %1106 = vmatprep.subr.mxu0 0.0
        %1107 = vmatpush1.msra.mxu0 0.0
        %1108 = vmatprep.subr.mxu0 0.0
        %1109 = vmatpush1.msra.mxu0 0.0
        %1110 = vmatprep.subr.mxu0 0.0
        %1111 = vmatpush1.msra.mxu0 0.0
        %1112 = vmatprep.subr.mxu0 0.0
        %1113 = vmatpush1.msra.mxu0 0.0
        %1114 = vmatprep.subr.mxu0 0.0
        %1115 = vmatpush1.msra.mxu0 0.0
        %1116 = vmatprep.subr.mxu0 0.0
        %1117 = vmatpush1.msra.mxu0 0.0
        %1118 = vmatprep.subr.mxu0 0.0
        %1119 = vmatpush1.msra.mxu0 0.0
        %1120 = vmatprep.subr.mxu0 0.0
        %1121 = vmatpush1.msra.mxu0 0.0
        %1122 = vmatprep.subr.mxu0 0.0
        %1123 = vmatpush1.msra.mxu0 0.0
        %1124 = vmatprep.subr.mxu0 0.0
        %1125 = vmatpush1.msra.mxu0 0.0
        %1126 = vmatprep.subr.mxu0 0.0
        %1127 = vmatpush1.msra.mxu0 0.0
        %1128 = vmatprep.mubr.f32.mxu0 0.0
        %1129 = vmatmul.mubr.f32.gmra.mrb[0].mxu0 %v1062
        %v1130 = vpop.f32.mrb[0].mxu0
        %v1131 = vadd.f32 0.0, %v1130
        %v1132 = vpop.f32.mrb[0].mxu0
        %1133 = vdwg.mxu0
        %v1135 = vsel %vm1016, %v1058, 0
        %1137 = vmatprep.subr.mxu0 0.0
        %1138 = vmatpush1.msra.mxu0 %v694
        %1139 = vmatprep.subr.mxu0 0.0
        %1140 = vmatpush1.msra.mxu0 %v696
        %1141 = vmatprep.subr.mxu0 0.0
        %1142 = vmatpush1.msra.mxu0 0.0
        %1143 = vmatprep.subr.mxu0 0.0
        %1144 = vmatpush1.msra.mxu0 0.0
        %1145 = vmatprep.subr.mxu0 0.0
        %1146 = vmatpush1.msra.mxu0 0.0
        %1147 = vmatprep.subr.mxu0 0.0
        %1148 = vmatpush1.msra.mxu0 0.0
        %1149 = vmatprep.subr.mxu0 0.0
        %1150 = vmatpush1.msra.mxu0 0.0
        %1151 = vmatprep.subr.mxu0 0.0
        %1152 = vmatpush1.msra.mxu0 0.0
        %1153 = vmatprep.subr.mxu0 0.0
        %1154 = vmatpush1.msra.mxu0 0.0
        %1155 = vmatprep.subr.mxu0 0.0
        %1156 = vmatpush1.msra.mxu0 0.0
        %1157 = vmatprep.subr.mxu0 0.0
        %1158 = vmatpush1.msra.mxu0 0.0
        %1159 = vmatprep.subr.mxu0 0.0
        %1160 = vmatpush1.msra.mxu0 0.0
        %1161 = vmatprep.subr.mxu0 0.0
        %1162 = vmatpush1.msra.mxu0 0.0
        %1163 = vmatprep.subr.mxu0 0.0
        %1164 = vmatpush1.msra.mxu0 0.0
        %1165 = vmatprep.subr.mxu0 0.0
        %1166 = vmatpush1.msra.mxu0 0.0
        %1167 = vmatprep.subr.mxu0 0.0
        %1168 = vmatpush1.msra.mxu0 0.0
        %1169 = vmatprep.subr.mxu0 0.0
        %1170 = vmatpush1.msra.mxu0 0.0
        %1171 = vmatprep.subr.mxu0 0.0
        %1172 = vmatpush1.msra.mxu0 0.0
        %1173 = vmatprep.subr.mxu0 0.0
        %1174 = vmatpush1.msra.mxu0 0.0
        %1175 = vmatprep.subr.mxu0 0.0
        %1176 = vmatpush1.msra.mxu0 0.0
        %1177 = vmatprep.subr.mxu0 0.0
        %1178 = vmatpush1.msra.mxu0 0.0
        %1179 = vmatprep.subr.mxu0 0.0
        %1180 = vmatpush1.msra.mxu0 0.0
        %1181 = vmatprep.subr.mxu0 0.0
        %1182 = vmatpush1.msra.mxu0 0.0
        %1183 = vmatprep.subr.mxu0 0.0
        %1184 = vmatpush1.msra.mxu0 0.0
        %1185 = vmatprep.subr.mxu0 0.0
        %1186 = vmatpush1.msra.mxu0 0.0
        %1187 = vmatprep.subr.mxu0 0.0
        %1188 = vmatpush1.msra.mxu0 0.0
        %1189 = vmatprep.subr.mxu0 0.0
        %1190 = vmatpush1.msra.mxu0 0.0
        %1191 = vmatprep.subr.mxu0 0.0
        %1192 = vmatpush1.msra.mxu0 0.0
        %1193 = vmatprep.subr.mxu0 0.0
        %1194 = vmatpush1.msra.mxu0 0.0
        %1195 = vmatprep.subr.mxu0 0.0
        %1196 = vmatpush1.msra.mxu0 0.0
        %1197 = vmatprep.subr.mxu0 0.0
        %1198 = vmatpush1.msra.mxu0 0.0
        %1199 = vmatprep.subr.mxu0 0.0
        %1200 = vmatpush1.msra.mxu0 0.0
        %1201 = vmatprep.mubr.f32.mxu0 0.0
        %1202 = vmatmul.mubr.f32.gmra.mrb[0].mxu0 %v1135
        %v1203 = vpop.f32.mrb[0].mxu0
        %v1204 = vadd.f32 0.0, %v1203
        %v1205 = vpop.f32.mrb[0].mxu0
        %1206 = vdwg.mxu0
        %v1208 = vsel %vm1016, %v1059, 0
        %1210 = vmatprep.subr.mxu0 0.0
        %1211 = vmatpush1.msra.mxu0 %v700
        %1212 = vmatprep.subr.mxu0 0.0
        %1213 = vmatpush1.msra.mxu0 %v702
        %1214 = vmatprep.subr.mxu0 0.0
        %1215 = vmatpush1.msra.mxu0 0.0
        %1216 = vmatprep.subr.mxu0 0.0
        %1217 = vmatpush1.msra.mxu0 0.0
        %1218 = vmatprep.subr.mxu0 0.0
        %1219 = vmatpush1.msra.mxu0 0.0
        %1220 = vmatprep.subr.mxu0 0.0
        %1221 = vmatpush1.msra.mxu0 0.0
        %1222 = vmatprep.subr.mxu0 0.0
        %1223 = vmatpush1.msra.mxu0 0.0
        %1224 = vmatprep.subr.mxu0 0.0
        %1225 = vmatpush1.msra.mxu0 0.0
        %1226 = vmatprep.subr.mxu0 0.0
        %1227 = vmatpush1.msra.mxu0 0.0
        %1228 = vmatprep.subr.mxu0 0.0
        %1229 = vmatpush1.msra.mxu0 0.0
        %1230 = vmatprep.subr.mxu0 0.0
        %1231 = vmatpush1.msra.mxu0 0.0
        %1232 = vmatprep.subr.mxu0 0.0
        %1233 = vmatpush1.msra.mxu0 0.0
        %1234 = vmatprep.subr.mxu0 0.0
        %1235 = vmatpush1.msra.mxu0 0.0
        %1236 = vmatprep.subr.mxu0 0.0
        %1237 = vmatpush1.msra.mxu0 0.0
        %1238 = vmatprep.subr.mxu0 0.0
        %1239 = vmatpush1.msra.mxu0 0.0
        %1240 = vmatprep.subr.mxu0 0.0
        %1241 = vmatpush1.msra.mxu0 0.0
        %1242 = vmatprep.subr.mxu0 0.0
        %1243 = vmatpush1.msra.mxu0 0.0
        %1244 = vmatprep.subr.mxu0 0.0
        %1245 = vmatpush1.msra.mxu0 0.0
        %1246 = vmatprep.subr.mxu0 0.0
        %1247 = vmatpush1.msra.mxu0 0.0
        %1248 = vmatprep.subr.mxu0 0.0
        %1249 = vmatpush1.msra.mxu0 0.0
        %1250 = vmatprep.subr.mxu0 0.0
        %1251 = vmatpush1.msra.mxu0 0.0
        %1252 = vmatprep.subr.mxu0 0.0
        %1253 = vmatpush1.msra.mxu0 0.0
        %1254 = vmatprep.subr.mxu0 0.0
        %1255 = vmatpush1.msra.mxu0 0.0
        %1256 = vmatprep.subr.mxu0 0.0
        %1257 = vmatpush1.msra.mxu0 0.0
        %1258 = vmatprep.subr.mxu0 0.0
        %1259 = vmatpush1.msra.mxu0 0.0
        %1260 = vmatprep.subr.mxu0 0.0
        %1261 = vmatpush1.msra.mxu0 0.0
        %1262 = vmatprep.subr.mxu0 0.0
        %1263 = vmatpush1.msra.mxu0 0.0
        %1264 = vmatprep.subr.mxu0 0.0
        %1265 = vmatpush1.msra.mxu0 0.0
        %1266 = vmatprep.subr.mxu0 0.0
        %1267 = vmatpush1.msra.mxu0 0.0
        %1268 = vmatprep.subr.mxu0 0.0
        %1269 = vmatpush1.msra.mxu0 0.0
        %1270 = vmatprep.subr.mxu0 0.0
        %1271 = vmatpush1.msra.mxu0 0.0
        %1272 = vmatprep.subr.mxu0 0.0
        %1273 = vmatpush1.msra.mxu0 0.0
        %1274 = vmatprep.mubr.f32.mxu0 0.0
        %1275 = vmatmul.mubr.f32.gmra.mrb[0].mxu0 %v1208
        %v1276 = vpop.f32.mrb[0].mxu0
        %v1277 = vadd.f32 0.0, %v1276
        %v1278 = vpop.f32.mrb[0].mxu0
        %1279 = vdwg.mxu0
        %v1281 = vsel %vm1016, %v1060, 0
        %1283 = vmatprep.subr.mxu0 0.0
        %1284 = vmatpush1.msra.mxu0 %v706
        %1285 = vmatprep.subr.mxu0 0.0
        %1286 = vmatpush1.msra.mxu0 %v708
        %1287 = vmatprep.subr.mxu0 0.0
        %1288 = vmatpush1.msra.mxu0 0.0
        %1289 = vmatprep.subr.mxu0 0.0
        %1290 = vmatpush1.msra.mxu0 0.0
        %1291 = vmatprep.subr.mxu0 0.0
        %1292 = vmatpush1.msra.mxu0 0.0
        %1293 = vmatprep.subr.mxu0 0.0
        %1294 = vmatpush1.msra.mxu0 0.0
        %1295 = vmatprep.subr.mxu0 0.0
        %1296 = vmatpush1.msra.mxu0 0.0
        %1297 = vmatprep.subr.mxu0 0.0
        %1298 = vmatpush1.msra.mxu0 0.0
        %1299 = vmatprep.subr.mxu0 0.0
        %1300 = vmatpush1.msra.mxu0 0.0
        %1301 = vmatprep.subr.mxu0 0.0
        %1302 = vmatpush1.msra.mxu0 0.0
        %1303 = vmatprep.subr.mxu0 0.0
        %1304 = vmatpush1.msra.mxu0 0.0
        %1305 = vmatprep.subr.mxu0 0.0
        %1306 = vmatpush1.msra.mxu0 0.0
        %1307 = vmatprep.subr.mxu0 0.0
        %1308 = vmatpush1.msra.mxu0 0.0
        %1309 = vmatprep.subr.mxu0 0.0
        %1310 = vmatpush1.msra.mxu0 0.0
        %1311 = vmatprep.subr.mxu0 0.0
        %1312 = vmatpush1.msra.mxu0 0.0
        %1313 = vmatprep.subr.mxu0 0.0
        %1314 = vmatpush1.msra.mxu0 0.0
        %1315 = vmatprep.subr.mxu0 0.0
        %1316 = vmatpush1.msra.mxu0 0.0
        %1317 = vmatprep.subr.mxu0 0.0
        %1318 = vmatpush1.msra.mxu0 0.0
        %1319 = vmatprep.subr.mxu0 0.0
        %1320 = vmatpush1.msra.mxu0 0.0
        %1321 = vmatprep.subr.mxu0 0.0
        %1322 = vmatpush1.msra.mxu0 0.0
        %1323 = vmatprep.subr.mxu0 0.0
        %1324 = vmatpush1.msra.mxu0 0.0
        %1325 = vmatprep.subr.mxu0 0.0
        %1326 = vmatpush1.msra.mxu0 0.0
        %1327 = vmatprep.subr.mxu0 0.0
        %1328 = vmatpush1.msra.mxu0 0.0
        %1329 = vmatprep.subr.mxu0 0.0
        %1330 = vmatpush1.msra.mxu0 0.0
        %1331 = vmatprep.subr.mxu0 0.0
        %1332 = vmatpush1.msra.mxu0 0.0
        %1333 = vmatprep.subr.mxu0 0.0
        %1334 = vmatpush1.msra.mxu0 0.0
        %1335 = vmatprep.subr.mxu0 0.0
        %1336 = vmatpush1.msra.mxu0 0.0
        %1337 = vmatprep.subr.mxu0 0.0
        %1338 = vmatpush1.msra.mxu0 0.0
        %1339 = vmatprep.subr.mxu0 0.0
        %1340 = vmatpush1.msra.mxu0 0.0
        %1341 = vmatprep.subr.mxu0 0.0
        %1342 = vmatpush1.msra.mxu0 0.0
        %1343 = vmatprep.subr.mxu0 0.0
        %1344 = vmatpush1.msra.mxu0 0.0
        %1345 = vmatprep.subr.mxu0 0.0
        %1346 = vmatpush1.msra.mxu0 0.0
        %1347 = vmatprep.mubr.f32.mxu0 0.0
        %1348 = vmatmul.mubr.f32.gmra.mrb[0].mxu0 %v1281
        %v1349 = vpop.f32.mrb[0].mxu0
        %v1350 = vadd.f32 0.0, %v1349
        %v1351 = vpop.f32.mrb[0].mxu0
        %1352 = vdwg.mxu0
        %v1354 = vsel %vm711, %v1131, 0
        %1356 = vmatprep.subr.mxu0 0.0
        %1357 = vmatpush1.msra.mxu0 %v412
        %1358 = vmatprep.subr.mxu0 0.0
        %1359 = vmatpush1.msra.mxu0 0.0
        %1360 = vmatprep.subr.mxu0 0.0
        %1361 = vmatpush1.msra.mxu0 0.0
        %1362 = vmatprep.subr.mxu0 0.0
        %1363 = vmatpush1.msra.mxu0 0.0
        %1364 = vmatprep.subr.mxu0 0.0
        %1365 = vmatpush1.msra.mxu0 0.0
        %1366 = vmatprep.subr.mxu0 0.0
        %1367 = vmatpush1.msra.mxu0 0.0
        %1368 = vmatprep.subr.mxu0 0.0
        %1369 = vmatpush1.msra.mxu0 0.0
        %1370 = vmatprep.subr.mxu0 0.0
        %1371 = vmatpush1.msra.mxu0 0.0
        %1372 = vmatprep.subr.mxu0 0.0
        %1373 = vmatpush1.msra.mxu0 0.0
        %1374 = vmatprep.subr.mxu0 0.0
        %1375 = vmatpush1.msra.mxu0 0.0
        %1376 = vmatprep.subr.mxu0 0.0
        %1377 = vmatpush1.msra.mxu0 0.0
        %1378 = vmatprep.subr.mxu0 0.0
        %1379 = vmatpush1.msra.mxu0 0.0
        %1380 = vmatprep.subr.mxu0 0.0
        %1381 = vmatpush1.msra.mxu0 0.0
        %1382 = vmatprep.subr.mxu0 0.0
        %1383 = vmatpush1.msra.mxu0 0.0
        %1384 = vmatprep.subr.mxu0 0.0
        %1385 = vmatpush1.msra.mxu0 0.0
        %1386 = vmatprep.subr.mxu0 0.0
        %1387 = vmatpush1.msra.mxu0 0.0
        %1388 = vmatprep.subr.mxu0 0.0
        %1389 = vmatpush1.msra.mxu0 0.0
        %1390 = vmatprep.subr.mxu0 0.0
        %1391 = vmatpush1.msra.mxu0 0.0
        %1392 = vmatprep.subr.mxu0 0.0
        %1393 = vmatpush1.msra.mxu0 0.0
        %1394 = vmatprep.subr.mxu0 0.0
        %1395 = vmatpush1.msra.mxu0 0.0
        %1396 = vmatprep.subr.mxu0 0.0
        %1397 = vmatpush1.msra.mxu0 0.0
        %1398 = vmatprep.subr.mxu0 0.0
        %1399 = vmatpush1.msra.mxu0 0.0
        %1400 = vmatprep.subr.mxu0 0.0
        %1401 = vmatpush1.msra.mxu0 0.0
        %1402 = vmatprep.subr.mxu0 0.0
        %1403 = vmatpush1.msra.mxu0 0.0
        %1404 = vmatprep.subr.mxu0 0.0
        %1405 = vmatpush1.msra.mxu0 0.0
        %1406 = vmatprep.subr.mxu0 0.0
        %1407 = vmatpush1.msra.mxu0 0.0
        %1408 = vmatprep.subr.mxu0 0.0
        %1409 = vmatpush1.msra.mxu0 0.0
        %1410 = vmatprep.subr.mxu0 0.0
        %1411 = vmatpush1.msra.mxu0 0.0
        %1412 = vmatprep.subr.mxu0 0.0
        %1413 = vmatpush1.msra.mxu0 0.0
        %1414 = vmatprep.subr.mxu0 0.0
        %1415 = vmatpush1.msra.mxu0 0.0
        %1416 = vmatprep.subr.mxu0 0.0
        %1417 = vmatpush1.msra.mxu0 0.0
        %1418 = vmatprep.subr.mxu0 0.0
        %1419 = vmatpush1.msra.mxu0 0.0
        %1420 = vmatprep.mubr.f32.mxu0 0.0
        %1421 = vmatmul.mubr.f32.gmra.mrb[0].mxu0 %v1354
        %v1422 = vpop.f32.mrb[0].mxu0
        %v1423 = vadd.f32 0.0, %v1422
        %v1424 = vpop.f32.mrb[0].mxu0
        %1425 = vdwg.mxu0
        %v1427 = vsel %vm711, %v1204, 0
        %1429 = vmatprep.subr.mxu0 0.0
        %1430 = vmatpush1.msra.mxu0 %v413
        %1431 = vmatprep.subr.mxu0 0.0
        %1432 = vmatpush1.msra.mxu0 0.0
        %1433 = vmatprep.subr.mxu0 0.0
        %1434 = vmatpush1.msra.mxu0 0.0
        %1435 = vmatprep.subr.mxu0 0.0
        %1436 = vmatpush1.msra.mxu0 0.0
        %1437 = vmatprep.subr.mxu0 0.0
        %1438 = vmatpush1.msra.mxu0 0.0
        %1439 = vmatprep.subr.mxu0 0.0
        %1440 = vmatpush1.msra.mxu0 0.0
        %1441 = vmatprep.subr.mxu0 0.0
        %1442 = vmatpush1.msra.mxu0 0.0
        %1443 = vmatprep.subr.mxu0 0.0
        %1444 = vmatpush1.msra.mxu0 0.0
        %1445 = vmatprep.subr.mxu0 0.0
        %1446 = vmatpush1.msra.mxu0 0.0
        %1447 = vmatprep.subr.mxu0 0.0
        %1448 = vmatpush1.msra.mxu0 0.0
        %1449 = vmatprep.subr.mxu0 0.0
        %1450 = vmatpush1.msra.mxu0 0.0
        %1451 = vmatprep.subr.mxu0 0.0
        %1452 = vmatpush1.msra.mxu0 0.0
        %1453 = vmatprep.subr.mxu0 0.0
        %1454 = vmatpush1.msra.mxu0 0.0
        %1455 = vmatprep.subr.mxu0 0.0
        %1456 = vmatpush1.msra.mxu0 0.0
        %1457 = vmatprep.subr.mxu0 0.0
        %1458 = vmatpush1.msra.mxu0 0.0
        %1459 = vmatprep.subr.mxu0 0.0
        %1460 = vmatpush1.msra.mxu0 0.0
        %1461 = vmatprep.subr.mxu0 0.0
        %1462 = vmatpush1.msra.mxu0 0.0
        %1463 = vmatprep.subr.mxu0 0.0
        %1464 = vmatpush1.msra.mxu0 0.0
        %1465 = vmatprep.subr.mxu0 0.0
        %1466 = vmatpush1.msra.mxu0 0.0
        %1467 = vmatprep.subr.mxu0 0.0
        %1468 = vmatpush1.msra.mxu0 0.0
        %1469 = vmatprep.subr.mxu0 0.0
        %1470 = vmatpush1.msra.mxu0 0.0
        %1471 = vmatprep.subr.mxu0 0.0
        %1472 = vmatpush1.msra.mxu0 0.0
        %1473 = vmatprep.subr.mxu0 0.0
        %1474 = vmatpush1.msra.mxu0 0.0
        %1475 = vmatprep.subr.mxu0 0.0
        %1476 = vmatpush1.msra.mxu0 0.0
        %1477 = vmatprep.subr.mxu0 0.0
        %1478 = vmatpush1.msra.mxu0 0.0
        %1479 = vmatprep.subr.mxu0 0.0
        %1480 = vmatpush1.msra.mxu0 0.0
        %1481 = vmatprep.subr.mxu0 0.0
        %1482 = vmatpush1.msra.mxu0 0.0
        %1483 = vmatprep.subr.mxu0 0.0
        %1484 = vmatpush1.msra.mxu0 0.0
        %1485 = vmatprep.subr.mxu0 0.0
        %1486 = vmatpush1.msra.mxu0 0.0
        %1487 = vmatprep.subr.mxu0 0.0
        %1488 = vmatpush1.msra.mxu0 0.0
        %1489 = vmatprep.subr.mxu0 0.0
        %1490 = vmatpush1.msra.mxu0 0.0
        %1491 = vmatprep.subr.mxu0 0.0
        %1492 = vmatpush1.msra.mxu0 0.0
        %1493 = vmatprep.mubr.f32.mxu0 0.0
        %1494 = vmatmul.mubr.f32.gmra.mrb[0].mxu0 %v1427
        %v1495 = vpop.f32.mrb[0].mxu0
        %v1496 = vadd.f32 0.0, %v1495
        %v1497 = vpop.f32.mrb[0].mxu0
        %1498 = vdwg.mxu0
        %v1500 = vsel %vm711, %v1277, 0
        %1502 = vmatprep.subr.mxu0 0.0
        %1503 = vmatpush1.msra.mxu0 %v414
        %1504 = vmatprep.subr.mxu0 0.0
        %1505 = vmatpush1.msra.mxu0 0.0
        %1506 = vmatprep.subr.mxu0 0.0
        %1507 = vmatpush1.msra.mxu0 0.0
        %1508 = vmatprep.subr.mxu0 0.0
        %1509 = vmatpush1.msra.mxu0 0.0
        %1510 = vmatprep.subr.mxu0 0.0
        %1511 = vmatpush1.msra.mxu0 0.0
        %1512 = vmatprep.subr.mxu0 0.0
        %1513 = vmatpush1.msra.mxu0 0.0
        %1514 = vmatprep.subr.mxu0 0.0
        %1515 = vmatpush1.msra.mxu0 0.0
        %1516 = vmatprep.subr.mxu0 0.0
        %1517 = vmatpush1.msra.mxu0 0.0
        %1518 = vmatprep.subr.mxu0 0.0
        %1519 = vmatpush1.msra.mxu0 0.0
        %1520 = vmatprep.subr.mxu0 0.0
        %1521 = vmatpush1.msra.mxu0 0.0
        %1522 = vmatprep.subr.mxu0 0.0
        %1523 = vmatpush1.msra.mxu0 0.0
        %1524 = vmatprep.subr.mxu0 0.0
        %1525 = vmatpush1.msra.mxu0 0.0
        %1526 = vmatprep.subr.mxu0 0.0
        %1527 = vmatpush1.msra.mxu0 0.0
        %1528 = vmatprep.subr.mxu0 0.0
        %1529 = vmatpush1.msra.mxu0 0.0
        %1530 = vmatprep.subr.mxu0 0.0
        %1531 = vmatpush1.msra.mxu0 0.0
        %1532 = vmatprep.subr.mxu0 0.0
        %1533 = vmatpush1.msra.mxu0 0.0
        %1534 = vmatprep.subr.mxu0 0.0
        %1535 = vmatpush1.msra.mxu0 0.0
        %1536 = vmatprep.subr.mxu0 0.0
        %1537 = vmatpush1.msra.mxu0 0.0
        %1538 = vmatprep.subr.mxu0 0.0
        %1539 = vmatpush1.msra.mxu0 0.0
        %1540 = vmatprep.subr.mxu0 0.0
        %1541 = vmatpush1.msra.mxu0 0.0
        %1542 = vmatprep.subr.mxu0 0.0
        %1543 = vmatpush1.msra.mxu0 0.0
        %1544 = vmatprep.subr.mxu0 0.0
        %1545 = vmatpush1.msra.mxu0 0.0
        %1546 = vmatprep.subr.mxu0 0.0
        %1547 = vmatpush1.msra.mxu0 0.0
        %1548 = vmatprep.subr.mxu0 0.0
        %1549 = vmatpush1.msra.mxu0 0.0
        %1550 = vmatprep.subr.mxu0 0.0
        %1551 = vmatpush1.msra.mxu0 0.0
        %1552 = vmatprep.subr.mxu0 0.0
        %1553 = vmatpush1.msra.mxu0 0.0
        %1554 = vmatprep.subr.mxu0 0.0
        %1555 = vmatpush1.msra.mxu0 0.0
        %1556 = vmatprep.subr.mxu0 0.0
        %1557 = vmatpush1.msra.mxu0 0.0
        %1558 = vmatprep.subr.mxu0 0.0
        %1559 = vmatpush1.msra.mxu0 0.0
        %1560 = vmatprep.subr.mxu0 0.0
        %1561 = vmatpush1.msra.mxu0 0.0
        %1562 = vmatprep.subr.mxu0 0.0
        %1563 = vmatpush1.msra.mxu0 0.0
        %1564 = vmatprep.subr.mxu0 0.0
        %1565 = vmatpush1.msra.mxu0 0.0
        %1566 = vmatprep.mubr.f32.mxu0 0.0
        %1567 = vmatmul.mubr.f32.gmra.mrb[0].mxu0 %v1500
        %v1568 = vpop.f32.mrb[0].mxu0
        %v1569 = vadd.f32 0.0, %v1568
        %v1570 = vpop.f32.mrb[0].mxu0
        %1571 = vdwg.mxu0
        %v1573 = vsel %vm711, %v1350, 0
        %1575 = vmatprep.subr.mxu0 0.0
        %1576 = vmatpush1.msra.mxu0 %v415
        %1577 = vmatprep.subr.mxu0 0.0
        %1578 = vmatpush1.msra.mxu0 0.0
        %1579 = vmatprep.subr.mxu0 0.0
        %1580 = vmatpush1.msra.mxu0 0.0
        %1581 = vmatprep.subr.mxu0 0.0
        %1582 = vmatpush1.msra.mxu0 0.0
        %1583 = vmatprep.subr.mxu0 0.0
        %1584 = vmatpush1.msra.mxu0 0.0
        %1585 = vmatprep.subr.mxu0 0.0
        %1586 = vmatpush1.msra.mxu0 0.0
        %1587 = vmatprep.subr.mxu0 0.0
        %1588 = vmatpush1.msra.mxu0 0.0
        %1589 = vmatprep.subr.mxu0 0.0
        %1590 = vmatpush1.msra.mxu0 0.0
        %1591 = vmatprep.subr.mxu0 0.0
        %1592 = vmatpush1.msra.mxu0 0.0
        %1593 = vmatprep.subr.mxu0 0.0
        %1594 = vmatpush1.msra.mxu0 0.0
        %1595 = vmatprep.subr.mxu0 0.0
        %1596 = vmatpush1.msra.mxu0 0.0
        %1597 = vmatprep.subr.mxu0 0.0
        %1598 = vmatpush1.msra.mxu0 0.0
        %1599 = vmatprep.subr.mxu0 0.0
        %1600 = vmatpush1.msra.mxu0 0.0
        %1601 = vmatprep.subr.mxu0 0.0
        %1602 = vmatpush1.msra.mxu0 0.0
        %1603 = vmatprep.subr.mxu0 0.0
        %1604 = vmatpush1.msra.mxu0 0.0
        %1605 = vmatprep.subr.mxu0 0.0
        %1606 = vmatpush1.msra.mxu0 0.0
        %1607 = vmatprep.subr.mxu0 0.0
        %1608 = vmatpush1.msra.mxu0 0.0
        %1609 = vmatprep.subr.mxu0 0.0
        %1610 = vmatpush1.msra.mxu0 0.0
        %1611 = vmatprep.subr.mxu0 0.0
        %1612 = vmatpush1.msra.mxu0 0.0
        %1613 = vmatprep.subr.mxu0 0.0
        %1614 = vmatpush1.msra.mxu0 0.0
        %1615 = vmatprep.subr.mxu0 0.0
        %1616 = vmatpush1.msra.mxu0 0.0
        %1617 = vmatprep.subr.mxu0 0.0
        %1618 = vmatpush1.msra.mxu0 0.0
        %1619 = vmatprep.subr.mxu0 0.0
        %1620 = vmatpush1.msra.mxu0 0.0
        %1621 = vmatprep.subr.mxu0 0.0
        %1622 = vmatpush1.msra.mxu0 0.0
        %1623 = vmatprep.subr.mxu0 0.0
        %1624 = vmatpush1.msra.mxu0 0.0
        %1625 = vmatprep.subr.mxu0 0.0
        %1626 = vmatpush1.msra.mxu0 0.0
        %1627 = vmatprep.subr.mxu0 0.0
        %1628 = vmatpush1.msra.mxu0 0.0
        %1629 = vmatprep.subr.mxu0 0.0
        %1630 = vmatpush1.msra.mxu0 0.0
        %1631 = vmatprep.subr.mxu0 0.0
        %1632 = vmatpush1.msra.mxu0 0.0
        %1633 = vmatprep.subr.mxu0 0.0
        %1634 = vmatpush1.msra.mxu0 0.0
        %1635 = vmatprep.subr.mxu0 0.0
        %1636 = vmatpush1.msra.mxu0 0.0
        %1637 = vmatprep.subr.mxu0 0.0
        %1638 = vmatpush1.msra.mxu0 0.0
        %1639 = vmatprep.mubr.f32.mxu0 0.0
        %1640 = vmatmul.mubr.f32.gmra.mrb[0].mxu0 %v1573
        %v1641 = vpop.f32.mrb[0].mxu0
        %v1642 = vadd.f32 0.0, %v1641
        %v1643 = vpop.f32.mrb[0].mxu0
        %1644 = vdwg.mxu0
        %v1645 = vsel %vm426, %v1423, 0.0
        %v1646 = vsel %vm426, %v1496, 0.0
        %v1647 = vadd.f32 %v1645, %v1646
        %v1648 = vsel %vm426, %v1569, 0.0
        %v1649 = vadd.f32 %v1647, %v1648
        %v1650 = vsel %vm426, %v1642, 0.0
        %v1651 = vadd.f32 %v1649, %v1650
        %v1652 = vlaneseq
        %v1653 = vshrl.u32 %v1652, 7
        %v1654 = vsub.s32 0, %v1653
        %v1655 = vrot.slane %v419, %v1654
        %v1656 = vadd.f32 %v1651, %v1655
        %v1657 = vadd.f32 %v388, %v1656
        %v1658 = vsel %vm426, %v1657, 0.0
        %1659 = vadd.xlane.f32.xlu0 %v1658
        %v1660 = vpop.xlane.xlu0 %1659
        %v1661 = vrcp.pop 32.0
        %v1662 = vmul.f32 %v1660, %v1661
        %v1663 = vsub.f32 %v1657, %v1662
        %v1664 = vmul.f32 %v1663, %v1663
        %v1665 = vsel %vm426, %v1664, 0.0
        %1666 = vadd.xlane.f32.xlu0 %v1665
        %v1667 = vpop.xlane.xlu0 %1666
        %v1668 = vmul.f32 %v1667, %v1661
        %v1669 = vadd.f32 %v1668, 1e-05
        %v1670 = vrsqrt.pop %v1669
        %v1671 = vmul.f32 %v1663, %v1670
        %v1672 = vlaneseq
        %v1673 = vshrl.u32 %v1672, 7
        %v1674 = vsub.s32 0, %v1673
        %v1675 = vrot.slane %v420, %v1674
        %v1676 = vmul.f32 %v1671, %v1675
        %v1677 = vlaneseq
        %v1678 = vshrl.u32 %v1677, 7
        %v1679 = vsub.s32 0, %v1678
        %v1680 = vrot.slane %v421, %v1679
        %v1681 = vadd.f32 %v1676, %v1680
        %1682 = vst.msk [vmem:[%s383] sm:$0xff] %vm426, %v1681
        %s1683 = sand.u32 %s181, 1
        %s1684 = scalar_lea.sflag [#allocation4], %s1683
        %s1685 = sand.u32 %s181, 1
        %s1686 = smul.addr %s1685, 8
        %s1687 = scalar_lea.vmem [#allocation11], %s1686
        // Predicated region
        $region65: #{cross_attention_layer.1} parent=43 // pred_check
          %p1688 = pneg %p191
        $region66: #{cross_attention_layer.1} parent=43 // pred_check_branch
          %1690 = sbr.rel (%p1688) target = $region68
        $region67: #{cross_attention_layer.1} parent=43 // pred_region
          %s1692 = ssub.s32 128, 128
          %1693 = vsyncadd %s1684, %s1692
          %s1694 = smul.addr %s27, 128
          %s1695 = scalar_lea.hbm %s6, %s1694
          %s1697 = sshll.u32 %s1687, 4
          %s1698 = int_to_ptr.vmem [resolvable:$true] %s1697
          %1700 = dma.vmem_to_hbm [thread:$0]  %s1698, 128, %s1695, %s1684
        $region68: #{cross_attention_layer.1} parent=43 // pred_fallthru
          _
      $region44: #{cross_attention_layer.1} parent=5 // pred_fallthru
        _
      %p1701 = scmp.le.s32.totalorder 2, %s22
      // Predicated region
      $region69: #{cross_attention_layer.1} parent=5 // pred_check
        %p1702 = pneg %p1701
      $region70: #{cross_attention_layer.1} parent=5 // pred_check_branch
        %1704 = sbr.rel (%p1702) target = $region72
      $region71: #{cross_attention_layer.1} parent=5 // pred_region
        %s1705 = ssub.s32 %s22, 2
        // Predicated region
        $region73: #{cross_attention_layer.1} parent=71 // pred_check
          %p1706 = pneg %p197
        $region74: #{cross_attention_layer.1} parent=71 // pred_check_branch
          %1708 = sbr.rel (%p1706) target = $region76
        $region75: #{cross_attention_layer.1} parent=71 // pred_region
          %s1709 = sand.u32 %s182, 1
          %s1710 = scalar_lea.sflag [#allocation4], %s1709
          %s1711 = sand.u32 %s182, 1
          %s1712 = smul.addr %s1711, 8
          %s1713 = scalar_lea.vmem [#allocation11], %s1712
          %1714 = dma.done %s1710, 128
        $region76: #{cross_attention_layer.1} parent=71 // pred_fallthru
          _
      $region72: #{cross_attention_layer.1} parent=5 // pred_fallthru
        _
    $region6: #{cross_attention_layer.1} parent=1 // loop_footer
      %s26 = sadd.s32 1, %s22
    $region7: #{cross_attention_layer.1} parent=1 // loop_footer_branch
      %21 = sbr.rel target = $region3
    $region8: #{cross_attention_layer.1} parent=1 // loop_exit
      _
    %1715 = vsyncpa [#allocation3], 1
    %s1716 = scalar_lea.sflag [#allocation3], 1
    %1717 = vsyncpa %s1716, 1
    %1718 = vsyncpa [#allocation6], 1
    %s1719 = scalar_lea.sflag [#allocation6], 1
    %1720 = vsyncpa %s1719, 1
    %1721 = vsyncpa [#allocation9], 1
    %1722 = vsyncpa [#allocation4], 1
    %s1723 = scalar_lea.sflag [#allocation4], 1
    %1724 = vsyncpa %s1723, 1

</llo_original>
